<compile_context>
chip_gen: v7x
topology: tpu7x:2x2x1
jax: 0.10.0
libtpu: 0.0.40
codegen_flags: <defaults>
</compile_context>

<pallas_src>
import functools

import jax
import jax.numpy as jnp
import numpy as np
from jax.experimental import pallas as pl
from jax.experimental.pallas import tpu as pltpu


def _round_up(x, m):
    return ((x + m - 1) // m) * m


# --------------------------------------------------------------------------------------
# Kernel 1: row-tiled projection  h = X_aug @ W_aug  (incl. ones column)  + folded scores
# --------------------------------------------------------------------------------------
def _proj_kernel(x_ref, w_ref, wsc_ref, h_ref, sc_ref):
    x = x_ref[0]                                                      # [TM, Fin_aug] f32
    # f32 matmul on purpose: O(N*Fin*Fpad) is tiny next to the N^2 work and its outputs
    # feed exp(); h is stored bf16 for the big E@h MXU matmul.
    h = jnp.dot(x, w_ref[...], preferred_element_type=jnp.float32)   # [TM, Fpad]
    h_ref[0] = h.astype(h_ref.dtype)
    # folded attention scores: columns = (-s_src, -alpha*s_src, -s_dst, -alpha*s_dst)
    sc_ref[0] = jnp.dot(x, wsc_ref[...], preferred_element_type=jnp.float32)  # [TM, 4]


# --------------------------------------------------------------------------------------
# Kernel 2: tiled attention / aggregation.  grid = (B, Npad/TI, Npad/TJ), reduction over j.
# --------------------------------------------------------------------------------------
def _attn_kernel(adj_ref, h_ref, src_ref, dst_ref, out_ref, num_sc,
                 *, concat, tj, ones_col, use_min):
    j = pl.program_id(2)
    nj = pl.num_programs(2)

    @pl.when(j == 0)
    def _():
        num_sc[...] = jnp.zeros_like(num_sc)

    adj = adj_ref[0].astype(jnp.bfloat16)                 # [TI, TJ] 0/1 mask
    # -leakyrelu(s_i + s_j) == min(-(s_i+s_j), -alpha*(s_i+s_j)) for alpha <= 1
    ns = src_ref[0, :, 0:1] + dst_ref[0, 0:1, :]          # [TI,1] + [1,TJ] -> [TI,TJ]
    nsa = src_ref[0, :, 1:2] + dst_ref[0, 1:2, :]
    expo = jnp.minimum(ns, nsa) if use_min else jnp.maximum(ns, nsa)
    # clamp so exp never overflows: keeps 0-mask * huge finite (no inf*0 -> NaN poisoning)
    expo = jnp.minimum(expo, 80.0)
    e = jnp.exp(expo).astype(jnp.bfloat16) * adj          # masked edge weights, bf16

    j0 = pl.multiple_of(j * tj, tj)
    h_j = h_ref[0, pl.ds(j0, tj), :]                      # [TJ, Fpad] bf16, VMEM resident
    # rowsum(E) rides along in column `ones_col` of h -> one matmul gives num AND den.
    num_sc[...] += jnp.dot(e, h_j, preferred_element_type=jnp.float32)

    @pl.when(j == nj - 1)
    def _():
        num = num_sc[...]
        den = num[:, ones_col:ones_col + 1]               # rowsum(E) via the ones column
        hp = num / jnp.where(den == 0.0, 1.0, den)
        hp = jnp.where(den == 0.0, -9e15, hp)             # torch: 0/0 -> nan -> -9e15
        if concat:                                        # F.elu
            hp = jnp.where(hp > 0.0, hp, jnp.exp(hp) - 1.0)
        out_ref[0] = hp.astype(out_ref.dtype)             # (bf16 output would halve writeback)


def _choose_tiles(npad):
    """Row tile (int8 sublane axis) and column tile (lane / reduction axis)."""
    ti = npad
    for cand in (256, 128):
        if npad % cand == 0 and npad > cand:
            ti = cand
            break
    tj = npad
    for cand in (1024, 512, 256, 128):
        if npad % cand == 0 and npad > cand:
            tj = cand
            break
    return ti, tj


@functools.partial(jax.jit, static_argnames=("alpha", "concat"))
def sp_graph_attention(X, A, W, a, *, alpha=0.2, concat=True):
    B, N, Fin = X.shape
    Fout = W.shape[1]

    Npad = _round_up(N, 128)            # aligned, pipelined tiles for any N
    Fpad = _round_up(Fout + 1, 128)     # lane-dense features + one spare lane (ones column)
    Fin_aug = _round_up(Fin + 1, 8)     # +1 constant-one input feature, sublane aligned
    ones_col = Fout
    use_min = bool(alpha <= 1.0)        # leakyrelu(s) = max(s, alpha*s) iff alpha <= 1

    X = X.astype(jnp.float32)
    W = W.astype(jnp.float32)
    a = a.astype(jnp.float32)

    # augmented input: [real features | 1 | zero pad]; padded nodes are zero rows (+ ones feat)
    X_aug = jnp.zeros((B, Npad, Fin_aug), jnp.float32)
    X_aug = X_aug.at[:, :N, :Fin].set(X)
    X_aug = X_aug.at[:, :, Fin].set(1.0)

    # augmented weight: real W plus a 1 routing the constant feature into the ones column
    W_aug = jnp.zeros((Fin_aug, Fpad), jnp.float32)
    W_aug = W_aug.at[:Fin, :Fout].set(W)
    W_aug = W_aug.at[Fin, ones_col].set(1.0)

    # folded attention weights (hoists LeakyReLU sign/alpha + reductions out of the N^2 loop)
    w1 = W @ a[0, :Fout]
    w2 = W @ a[0, Fout:]
    Wsc = jnp.zeros((Fin_aug, 4), jnp.float32)
    Wsc = Wsc.at[:Fin, 0].set(-w1)
    Wsc = Wsc.at[:Fin, 1].set(-alpha * w1)
    Wsc = Wsc.at[:Fin, 2].set(-w2)
    Wsc = Wsc.at[:Fin, 3].set(-alpha * w2)

    # adjacency as int8 mask (dominant HBM stream: B*N^2 bytes), zero-padded to Npad
    A_i8 = (A != 0).astype(jnp.int8)
    if Npad != N:
        A_i8 = jnp.zeros((B, Npad, Npad), jnp.int8).at[:, :N, :N].set(A_i8)

    TM = Npad
    for cand in (512, 256, 128):
        if Npad % cand == 0 and Npad > cand:
            TM = cand
            break

    # ---- kernel 1: projection (+ ones column) and folded attention scores ----
    H, SC = pl.pallas_call(
        _proj_kernel,
        out_shape=(
            jax.ShapeDtypeStruct((B, Npad, Fpad), jnp.bfloat16),
            jax.ShapeDtypeStruct((B, Npad, 4), jnp.float32),
        ),
        grid_spec=pltpu.PrefetchScalarGridSpec(
            num_scalar_prefetch=0,
            grid=(B, Npad // TM),
            in_specs=[
                pl.BlockSpec((1, TM, Fin_aug), lambda b, m: (b, m, 0)),
                pl.BlockSpec((Fin_aug, Fpad), lambda b, m: (0, 0)),
                pl.BlockSpec((Fin_aug, 4), lambda b, m: (0, 0)),
            ],
            out_specs=[
                pl.BlockSpec((1, TM, Fpad), lambda b, m: (b, m, 0)),
                pl.BlockSpec((1, TM, 4), lambda b, m: (b, m, 0)),
            ],
        ),
        compiler_params=pltpu.CompilerParams(
            dimension_semantics=("parallel", "parallel")),
        cost_estimate=pl.CostEstimate(
            flops=2 * B * Npad * Fin_aug * (Fpad + 4),
            transcendentals=0,
            bytes_accessed=(B * Npad * Fin_aug * 4 + Fin_aug * (Fpad + 4) * 4
                            + B * Npad * Fpad * 2 + B * Npad * 4 * 4),
        ),
    )(X_aug, W_aug, Wsc)

    # tiny reshapes outside the kernel so the inner N^2 loop never transposes
    src_pair = SC[..., 0:2]                                # (B, Npad, 2): -s_src, -a*s_src
    dst_pair = jnp.transpose(SC[..., 2:4], (0, 2, 1))      # (B, 2, Npad): -s_dst, -a*s_dst

    TI, TJ = _choose_tiles(Npad)
    NI, NJ = Npad // TI, Npad // TJ

    vmem_need = (2 * TI * TJ + 2 * Npad * Fpad * 2 + 2 * TI * Fpad * 4
                 + TI * Fpad * 4 + (1 << 20))
    vmem_limit = int(max(32 * 1024 * 1024, min(2 * vmem_need, 64 * 1024 * 1024)))

    # ---- kernel 2: tiled attention with a single VMEM accumulator ----
    out_pad = pl.pallas_call(
        functools.partial(_attn_kernel, concat=concat, tj=TJ,
                          ones_col=ones_col, use_min=use_min),
        out_shape=jax.ShapeDtypeStruct((B, Npad, Fpad), jnp.float32),
        grid_spec=pltpu.PrefetchScalarGridSpec(
            num_scalar_prefetch=0,
            grid=(B, NI, NJ),
            in_specs=[
                pl.BlockSpec((1, TI, TJ), lambda b, i, j: (b, i, j)),      # adj tile (int8)
                pl.BlockSpec((1, Npad, Fpad), lambda b, i, j: (b, 0, 0)),  # h, resident per batch
                pl.BlockSpec((1, TI, 2), lambda b, i, j: (b, i, 0)),       # src score pair rows
                pl.BlockSpec((1, 2, TJ), lambda b, i, j: (b, 0, j)),       # dst score pair cols
            ],
            out_specs=pl.BlockSpec((1, TI, Fpad), lambda b, i, j: (b, i, 0)),
            scratch_shapes=[pltpu.VMEM((TI, Fpad), jnp.float32)],          # running numerator
        ),
        compiler_params=pltpu.CompilerParams(
            dimension_semantics=("parallel", "parallel", "arbitrary"),
            vmem_limit_bytes=vmem_limit,
        ),
        cost_estimate=pl.CostEstimate(
            flops=2 * B * Npad * Npad * Fpad + 6 * B * Npad * Npad,
            transcendentals=B * Npad * Npad,
            bytes_accessed=(B * Npad * Npad + B * Npad * Fpad * 2
                            + B * Npad * Fpad * 4 + B * Npad * 4 * 4),
        ),
    )(A_i8, H, src_pair, dst_pair)

    return out_pad[:, :N, :Fout]


# --------------------------------------------------------------------------------------
# Pure-JAX reference matching the torch forward (eval mode)
# --------------------------------------------------------------------------------------
def ref_forward(X, A, W, a, alpha=0.2, concat=True):
    Fout = W.shape[1]
    h = jnp.einsum("bnf,fo->bno", X, W)
    s1 = jnp.einsum("bno,o->bn", h, a[0, :Fout])
    s2 = jnp.einsum("bno,o->bn", h, a[0, Fout:])
    scores = s1[:, :, None] + s2[:, None, :]
    lrelu = jnp.where(scores >= 0.0, scores, alpha * scores)
    e = jnp.exp(-lrelu) * (A != 0)
    rowsum = jnp.sum(e, axis=-1, keepdims=True)
    hp = jnp.einsum("bij,bjo->bio", e, h) / jnp.where(rowsum == 0.0, 1.0, rowsum)
    hp = jnp.where(rowsum == 0.0, -9e15, hp)
    if concat:
        hp = jnp.where(hp > 0.0, hp, jnp.exp(hp) - 1.0)
    return hp


if __name__ == "__main__":
    def run_case(B, N, Fin, Fout, key):
        kx, kadj, kw, ka = jax.random.split(key, 4)
        X = jax.random.normal(kx, (B, N, Fin), dtype=jnp.float32)
        # deterministic sparse 0/1 adjacency with self loops, stored as int8
        A = jnp.logical_or(jax.random.uniform(kadj, (B, N, N)) < 0.15,
                           jnp.eye(N, dtype=bool)[None, :, :]).astype(jnp.int8)
        # xavier_normal_ with gain=1.414 (same shapes as the nn.Parameter init)
        gain = 1.414
        w_std = gain * np.sqrt(2.0 / (Fin + Fout))
        a_std = gain * np.sqrt(2.0 / (1 + 2 * Fout))
        W = (w_std * jax.random.normal(kw, (Fin, Fout))).astype(jnp.float32)
        a = (a_std * jax.random.normal(ka, (1, 2 * Fout))).astype(jnp.float32)

        out = jax.block_until_ready(sp_graph_attention(X, A, W, a, alpha=0.2, concat=True))
        ref = ref_forward(X, A, W, a, alpha=0.2, concat=True)
        # bf16 MXU path for both E@h and the folded rowsum -> relaxed tolerance vs f32 ref
        np.testing.assert_allclose(np.asarray(out), np.asarray(ref), rtol=2e-2, atol=2e-2)

    key = jax.random.PRNGKey(0)
    k1, k2 = jax.random.split(key)
    run_case(2, 16, 8, 8, k1)      # tiny shapes matching the module's toy usage (N padded to 128)
    run_case(2, 256, 32, 16, k2)   # exercises the (row-tile, col-tile) accumulation path
    print("KERNEL_OK")
</pallas_src>

<mosaic_0001>
module attributes {stable_mosaic.version = 11 : i64} {
  func.func @_proj_kernel(%arg0: i32, %arg1: i32, %arg2: memref<1x128x16xf32, #tpu.memory_space<vmem>>, %arg3: memref<16x128xf32, #tpu.memory_space<vmem>>, %arg4: memref<16x4xf32, #tpu.memory_space<vmem>>, %arg5: memref<1x128x128xbf16, #tpu.memory_space<vmem>>, %arg6: memref<1x128x4xf32, #tpu.memory_space<vmem>>) attributes {dimension_semantics = [#tpu.dimension_semantics<parallel>, #tpu.dimension_semantics<parallel>], iteration_bounds = array<i64: 2, 1>, scalar_prefetch = 0 : i64, scratch_operands = 0 : i64, tpu.core_type = #tpu.core_type<tc>, window_params = [{transform_indices = @transform_0, window_bounds = array<i64: 1, 128, 16>}, {pipeline_mode = #tpu.pipeline_mode<synchronous>, transform_indices = @transform_1, window_bounds = array<i64: 16, 128>}, {pipeline_mode = #tpu.pipeline_mode<synchronous>, transform_indices = @transform_2, window_bounds = array<i64: 16, 4>}, {transform_indices = @transform_3, window_bounds = array<i64: 1, 128, 128>}, {transform_indices = @transform_4, window_bounds = array<i64: 1, 128, 4>}]} {
    %c0 = arith.constant 0 : index
    %c0_0 = arith.constant 0 : index
    %c0_1 = arith.constant 0 : index
    %0 = vector.load %arg2[%c0, %c0_0, %c0_1] : memref<1x128x16xf32, #tpu.memory_space<vmem>>, vector<1x128x16xf32>
    %1 = vector.shape_cast %0 : vector<1x128x16xf32> to vector<128x16xf32>
    %c0_2 = arith.constant 0 : index
    %c0_3 = arith.constant 0 : index
    %2 = vector.load %arg3[%c0_2, %c0_3] : memref<16x128xf32, #tpu.memory_space<vmem>>, vector<16x128xf32>
    %cst = arith.constant dense<0.000000e+00> : vector<128x128xf32>
    %3 = tpu.matmul %1, %2, %cst {dimension_numbers = #tpu.dot_dimension_numbers<[1], [0], [0], [1], [0, 0, 1, 1], [], []>} : vector<128x16xf32>, vector<16x128xf32>, vector<128x128xf32> -> vector<128x128xf32>
    %4 = arith.truncf %3 : vector<128x128xf32> to vector<128x128xbf16>
    %c0_4 = arith.constant 0 : index
    %c0_5 = arith.constant 0 : index
    %c0_6 = arith.constant 0 : index
    %5 = vector.load %arg5[%c0_4, %c0_5, %c0_6] : memref<1x128x128xbf16, #tpu.memory_space<vmem>>, vector<1x128x128xbf16>
    %6 = vector.shape_cast %5 : vector<1x128x128xbf16> to vector<128x128xbf16>
    %7 = vector.shape_cast %4 : vector<128x128xbf16> to vector<1x128x128xbf16>
    tpu.vector_store %arg5[%c0_4, %c0_5, %c0_6], %7 {strides = array<i32>} : memref<1x128x128xbf16, #tpu.memory_space<vmem>>, vector<1x128x128xbf16>,
    %c0_7 = arith.constant 0 : index
    %c0_8 = arith.constant 0 : index
    %8 = vector.load %arg4[%c0_7, %c0_8] : memref<16x4xf32, #tpu.memory_space<vmem>>, vector<16x4xf32>
    %cst_9 = arith.constant dense<0.000000e+00> : vector<128x4xf32>
    %9 = tpu.matmul %1, %8, %cst_9 {dimension_numbers = #tpu.dot_dimension_numbers<[1], [0], [0], [1], [0, 0, 1, 1], [], []>} : vector<128x16xf32>, vector<16x4xf32>, vector<128x4xf32> -> vector<128x4xf32>
    %c0_10 = arith.constant 0 : index
    %c0_11 = arith.constant 0 : index
    %c0_12 = arith.constant 0 : index
    %10 = vector.load %arg6[%c0_10, %c0_11, %c0_12] : memref<1x128x4xf32, #tpu.memory_space<vmem>>, vector<1x128x4xf32>
    %11 = vector.shape_cast %10 : vector<1x128x4xf32> to vector<128x4xf32>
    %12 = vector.shape_cast %9 : vector<128x4xf32> to vector<1x128x4xf32>
    tpu.vector_store %arg6[%c0_10, %c0_11, %c0_12], %12 {strides = array<i32>} : memref<1x128x4xf32, #tpu.memory_space<vmem>>, vector<1x128x4xf32>,
    return
  }
  func.func @transform_0(%arg0: i32, %arg1: i32) -> (i32, i32, i32) {
    %c0_i32 = arith.constant 0 : i32
    %c0_i32_0 = arith.constant 0 : i32
    return %arg0, %arg1, %c0_i32 : i32, i32, i32
  }
  func.func @transform_1(%arg0: i32, %arg1: i32) -> (i32, i32) {
    %c0_i32 = arith.constant 0 : i32
    %c0_i32_0 = arith.constant 0 : i32
    %c0_i32_1 = arith.constant 0 : i32
    return %c0_i32, %c0_i32_0 : i32, i32
  }
  func.func @transform_2(%arg0: i32, %arg1: i32) -> (i32, i32) {
    %c0_i32 = arith.constant 0 : i32
    %c0_i32_0 = arith.constant 0 : i32
    %c0_i32_1 = arith.constant 0 : i32
    return %c0_i32, %c0_i32_0 : i32, i32
  }
  func.func @transform_3(%arg0: i32, %arg1: i32) -> (i32, i32, i32) {
    %c0_i32 = arith.constant 0 : i32
    %c0_i32_0 = arith.constant 0 : i32
    return %arg0, %arg1, %c0_i32 : i32, i32, i32
  }
  func.func @transform_4(%arg0: i32, %arg1: i32) -> (i32, i32, i32) {
    %c0_i32 = arith.constant 0 : i32
    %c0_i32_0 = arith.constant 0 : i32
    return %arg0, %arg1, %c0_i32 : i32, i32, i32
  }
}

module attributes {stable_mosaic.version = 11 : i64} {
  func.func @_attn_kernel(%arg0: i32, %arg1: i32, %arg2: i32, %arg3: memref<1x128x128xi8, #tpu.memory_space<vmem>>, %arg4: memref<1x128x128xbf16, #tpu.memory_space<vmem>>, %arg5: memref<1x128x2xf32, #tpu.memory_space<vmem>>, %arg6: memref<1x2x128xf32, #tpu.memory_space<vmem>>, %arg7: memref<1x128x128xf32, #tpu.memory_space<vmem>>, %arg8: memref<128x128xf32, #tpu.memory_space<vmem>>) attributes {dimension_semantics = [#tpu.dimension_semantics<parallel>, #tpu.dimension_semantics<parallel>, #tpu.dimension_semantics<arbitrary>], iteration_bounds = array<i64: 2, 1, 1>, scalar_prefetch = 0 : i64, scratch_operands = 1 : i64, tpu.core_type = #tpu.core_type<tc>, window_params = [{transform_indices = @transform_0, window_bounds = array<i64: 1, 128, 128>}, {transform_indices = @transform_1, window_bounds = array<i64: 1, 128, 128>}, {transform_indices = @transform_2, window_bounds = array<i64: 1, 128, 2>}, {transform_indices = @transform_3, window_bounds = array<i64: 1, 2, 128>}, {transform_indices = @transform_4, window_bounds = array<i64: 1, 128, 128>}]} {
    %c0_i32 = arith.constant 0 : i32
    %0 = arith.cmpi eq, %arg2, %c0_i32 : i32
    %1 = arith.extui %0 : i1 to i32
    %c0_i32_0 = arith.constant 0 : i32
    %2 = arith.cmpi ne, %1, %c0_i32_0 : i32
    scf.if %2 {
      %cst_23 = arith.constant 0.000000e+00 : f32
      %38 = vector.broadcast %cst_23 : f32 to vector<128x128xf32>
      %c0_24 = arith.constant 0 : index
      %c0_25 = arith.constant 0 : index
      %39 = vector.load %arg8[%c0_24, %c0_25] : memref<128x128xf32, #tpu.memory_space<vmem>>, vector<128x128xf32>
      tpu.vector_store %arg8[%c0_24, %c0_25], %38 {strides = array<i32>} : memref<128x128xf32, #tpu.memory_space<vmem>>, vector<128x128xf32>,
    } else {
    }
    %c0 = arith.constant 0 : index
    %c0_1 = arith.constant 0 : index
    %c0_2 = arith.constant 0 : index
    %3 = vector.load %arg3[%c0, %c0_1, %c0_2] : memref<1x128x128xi8, #tpu.memory_space<vmem>>, vector<1x128x128xi8>
    %4 = vector.shape_cast %3 : vector<1x128x128xi8> to vector<128x128xi8>
    %5 = arith.sitofp %4 : vector<128x128xi8> to vector<128x128xbf16>
    %c0_3 = arith.constant 0 : index
    %c0_4 = arith.constant 0 : index
    %c0_5 = arith.constant 0 : index
    %6 = vector.load %arg5[%c0_3, %c0_4, %c0_5] : memref<1x128x2xf32, #tpu.memory_space<vmem>>, vector<1x128x1xf32>
    %7 = vector.shape_cast %6 : vector<1x128x1xf32> to vector<128x1xf32>
    %c0_6 = arith.constant 0 : index
    %c0_7 = arith.constant 0 : index
    %c0_8 = arith.constant 0 : index
    %8 = vector.load %arg6[%c0_6, %c0_7, %c0_8] : memref<1x2x128xf32, #tpu.memory_space<vmem>>, vector<1x1x128xf32>
    %9 = vector.shape_cast %8 : vector<1x1x128xf32> to vector<1x128xf32>
    %10 = vector.broadcast %7 : vector<128x1xf32> to vector<128x128xf32>
    %11 = vector.broadcast %9 : vector<1x128xf32> to vector<128x128xf32>
    %12 = arith.addf %10, %11 : vector<128x128xf32>
    %c0_9 = arith.constant 0 : index
    %c0_10 = arith.constant 0 : index
    %c1 = arith.constant 1 : index
    %13 = vector.load %arg5[%c0_9, %c0_10, %c1] : memref<1x128x2xf32, #tpu.memory_space<vmem>>, vector<1x128x1xf32>
    %14 = vector.shape_cast %13 : vector<1x128x1xf32> to vector<128x1xf32>
    %c0_11 = arith.constant 0 : index
    %c1_12 = arith.constant 1 : index
    %c0_13 = arith.constant 0 : index
    %15 = vector.load %arg6[%c0_11, %c1_12, %c0_13] : memref<1x2x128xf32, #tpu.memory_space<vmem>>, vector<1x1x128xf32>
    %16 = vector.shape_cast %15 : vector<1x1x128xf32> to vector<1x128xf32>
    %17 = vector.broadcast %14 : vector<128x1xf32> to vector<128x128xf32>
    %18 = vector.broadcast %16 : vector<1x128xf32> to vector<128x128xf32>
    %19 = arith.addf %17, %18 : vector<128x128xf32>
    %20 = arith.minimumf %12, %19 : vector<128x128xf32>
    %cst = arith.constant 8.000000e+01 : f32
    %21 = vector.broadcast %cst : f32 to vector<128x128xf32>
    %22 = arith.minimumf %20, %21 : vector<128x128xf32>
    %23 = math.exp %22 : vector<128x128xf32>
    %24 = arith.truncf %23 : vector<128x128xf32> to vector<128x128xbf16>
    %25 = arith.mulf %24, %5 : vector<128x128xbf16>
    %c128_i32 = arith.constant 128 : i32
    %26 = arith.muli %arg2, %c128_i32 : i32
    %27 = tpu.assume_multiple %26, 128 : i32
    %c0_14 = arith.constant 0 : index
    %28 = arith.index_cast %27 : i32 to index
    %c0_15 = arith.constant 0 : index
    %29 = vector.load %arg4[%c0_14, %28, %c0_15] : memref<1x128x128xbf16, #tpu.memory_space<vmem>>, vector<1x128x128xbf16>
    %30 = vector.shape_cast %29 : vector<1x128x128xbf16> to vector<128x128xbf16>
    %c0_16 = arith.constant 0 : index
    %c0_17 = arith.constant 0 : index
    %31 = vector.load %arg8[%c0_16, %c0_17] : memref<128x128xf32, #tpu.memory_space<vmem>>, vector<128x128xf32>
    %cst_18 = arith.constant dense<0.000000e+00> : vector<128x128xf32>
    %32 = tpu.matmul %25, %30, %cst_18 {dimension_numbers = #tpu.dot_dimension_numbers<[1], [0], [0], [1], [0, 0, 1, 1], [], []>} : vector<128x128xbf16>, vector<128x128xbf16>, vector<128x128xf32> -> vector<128x128xf32>
    %33 = arith.addf %31, %32 : vector<128x128xf32>
    %c0_19 = arith.constant 0 : index
    %c0_20 = arith.constant 0 : index
    %34 = vector.load %arg8[%c0_19, %c0_20] : memref<128x128xf32, #tpu.memory_space<vmem>>, vector<128x128xf32>
    tpu.vector_store %arg8[%c0_19, %c0_20], %33 {strides = array<i32>} : memref<128x128xf32, #tpu.memory_space<vmem>>, vector<128x128xf32>,
    %c0_i32_21 = arith.constant 0 : i32
    %35 = arith.cmpi eq, %arg2, %c0_i32_21 : i32
    %36 = arith.extui %35 : i1 to i32
    %c0_i32_22 = arith.constant 0 : i32
    %37 = arith.cmpi ne, %36, %c0_i32_22 : i32
    scf.if %37 {
      %c0_23 = arith.constant 0 : index
      %c0_24 = arith.constant 0 : index
      %38 = vector.load %arg8[%c0_23, %c0_24] : memref<128x128xf32, #tpu.memory_space<vmem>>, vector<128x128xf32>
      %39 = vector.extract_strided_slice %38 {offsets = [0, 8], sizes = [128, 1], strides = [1, 1]} : vector<128x128xf32> to vector<128x1xf32>
      %cst_25 = arith.constant 0.000000e+00 : f32
      %40 = vector.broadcast %cst_25 : f32 to vector<128x1xf32>
      %41 = arith.cmpf oeq, %39, %40 : vector<128x1xf32>
      %cst_26 = arith.constant 1.000000e+00 : f32
      %42 = vector.broadcast %cst_26 : f32 to vector<128x1xf32>
      %43 = arith.select %41, %42, %39 : vector<128x1xi1>, vector<128x1xf32>
      %44 = vector.broadcast %43 : vector<128x1xf32> to vector<128x128xf32>
      %45 = arith.divf %38, %44 : vector<128x128xf32>
      %cst_27 = arith.constant 0.000000e+00 : f32
      %46 = vector.broadcast %cst_27 : f32 to vector<128x1xf32>
      %47 = arith.cmpf oeq, %39, %46 : vector<128x1xf32>
      %cst_28 = arith.constant -9.000000e+15 : f32
      %48 = vector.shape_cast %47 : vector<128x1xi1> to vector<128x1xi1>
      %49 = vector.broadcast %48 : vector<128x1xi1> to vector<128x128xi1>
      %50 = vector.broadcast %cst_28 : f32 to vector<128x128xf32>
      %51 = arith.select %49, %50, %45 : vector<128x128xi1>, vector<128x128xf32>
      %cst_29 = arith.constant 0.000000e+00 : f32
      %52 = vector.broadcast %cst_29 : f32 to vector<128x128xf32>
      %53 = arith.cmpf ogt, %51, %52 : vector<128x128xf32>
      %54 = math.exp %51 : vector<128x128xf32>
      %cst_30 = arith.constant 1.000000e+00 : f32
      %55 = vector.broadcast %cst_30 : f32 to vector<128x128xf32>
      %56 = arith.subf %54, %55 : vector<128x128xf32>
      %57 = arith.select %53, %51, %56 : vector<128x128xi1>, vector<128x128xf32>
      %c0_31 = arith.constant 0 : index
      %c0_32 = arith.constant 0 : index
      %c0_33 = arith.constant 0 : index
      %58 = vector.load %arg7[%c0_31, %c0_32, %c0_33] : memref<1x128x128xf32, #tpu.memory_space<vmem>>, vector<1x128x128xf32>
      %59 = vector.shape_cast %58 : vector<1x128x128xf32> to vector<128x128xf32>
      %60 = vector.shape_cast %57 : vector<128x128xf32> to vector<1x128x128xf32>
      tpu.vector_store %arg7[%c0_31, %c0_32, %c0_33], %60 {strides = array<i32>} : memref<1x128x128xf32, #tpu.memory_space<vmem>>, vector<1x128x128xf32>,
    } else {
    }
    return
  }
  func.func @transform_0(%arg0: i32, %arg1: i32, %arg2: i32) -> (i32, i32, i32) {
    %c0_i32 = arith.constant 0 : i32
    return %arg0, %arg1, %arg2 : i32, i32, i32
  }
  func.func @transform_1(%arg0: i32, %arg1: i32, %arg2: i32) -> (i32, i32, i32) {
    %c0_i32 = arith.constant 0 : i32
    %c0_i32_0 = arith.constant 0 : i32
    %c0_i32_1 = arith.constant 0 : i32
    return %arg0, %c0_i32, %c0_i32_0 : i32, i32, i32
  }
  func.func @transform_2(%arg0: i32, %arg1: i32, %arg2: i32) -> (i32, i32, i32) {
    %c0_i32 = arith.constant 0 : i32
    %c0_i32_0 = arith.constant 0 : i32
    return %arg0, %arg1, %c0_i32 : i32, i32, i32
  }
  func.func @transform_3(%arg0: i32, %arg1: i32, %arg2: i32) -> (i32, i32, i32) {
    %c0_i32 = arith.constant 0 : i32
    %c0_i32_0 = arith.constant 0 : i32
    return %arg0, %c0_i32, %arg2 : i32, i32, i32
  }
  func.func @transform_4(%arg0: i32, %arg1: i32, %arg2: i32) -> (i32, i32, i32) {
    %c0_i32 = arith.constant 0 : i32
    %c0_i32_0 = arith.constant 0 : i32
    return %arg0, %arg1, %c0_i32 : i32, i32, i32
  }
}

</mosaic_0001>

<llo_original>
// kernel: sp_graph_attention.2
$region0: #{sp_graph_attention.2}
  #allocation0 [shape = 'u32[]', space=smem, size = 0x4, offset = 0x4, fixed_abs, tag = 'smem constant byte address 0x4 - core index']
  #allocation1 [shape = 'u32[144,128]{1,0:T(1,128)}', space=vmem, size = 0x12000, scoped, tag = 'internal scratch']
  %s0 = inlined_call_operand.vmem [shape: f32[2,128,16], index: 0, kind: input, shape index: {}]
  %s1 = inlined_call_operand.vmem [shape: f32[16,128], index: 1, kind: input, shape index: {}]
  %s2 = inlined_call_operand.vmem [shape: f32[16,4], index: 2, kind: input, shape index: {}]
  %s3 = inlined_call_operand.vmem [shape: bf16[2,128,128], index: 3, kind: output, shape index: {0}]
  %s4 = inlined_call_operand.vmem [shape: f32[2,128,4], index: 4, kind: output, shape index: {1}]
  %5 = xla_tuple %s3, %s4
  %s6 = sld [smem:[#allocation0]]
  $region53: #{sp_graph_attention.2} parent=0
    _
  %s8 = ssub.s32 1, %s6
  %s9 = scalar_select 0, %s8, %s6
  loop: start=0, step=1, limit=4
  $region2: #{sp_graph_attention.2} parent=0 // loop_pre_header
    _
  $region3: #{sp_graph_attention.2} parent=0 // loop_header
    %s11 = sphi 0, %s15
    %p12 = scmp.ge.s32.totalorder %s11, 4
    %s18 = sphi 0, %s30
    %s19 = sphi 0, %s26
    %s20 = sphi 0, %s18
    %s21 = sphi 0, %s19
    %s22 = sphi 0, %s20
    %s23 = sphi 0, %s21
    %s35 = sphi 0, %s37
    %s38 = sphi 0, %s35
    %s39 = sphi 0, %s38
    %s55 = sphi 0, %s39
    %s59 = sphi 0, %s59
    %s61 = sphi 0, %s59
    %s62 = sphi 0, %s61
    %s76 = sphi 0, %s62
    %s80 = sphi 0, %s80
    %s82 = sphi 0, %s80
    %s83 = sphi 0, %s82
    %s97 = sphi 0, %s83
    %s105 = sphi 0, %s107
    %s108 = sphi 0, %s105
    %s109 = sphi 0, %s108
    %s125 = sphi 0, %s109
    %s133 = sphi 0, %s135
    %s136 = sphi 0, %s133
    %s137 = sphi 0, %s136
    %s153 = sphi 0, %s137
  $region4: #{sp_graph_attention.2} parent=0 // loop_header_branch
    %14 = sbr.rel (%p12) target = $region8
  $region5: #{sp_graph_attention.2} parent=0 // loop_body
    %s16 = ssub.s32 %s11, 1
    %s17 = ssub.s32 %s11, 2
    %s24 = sadd.s32 1, %s19
    %p25 = scmp.ge.s32.totalorder %s24, 1
    %s26 = scalar_select %p25, 0, %s24
    %s27 = sadd.s32 1, %s18
    %s28 = scalar_select %p25, %s27, %s18
    %p29 = scmp.ge.s32.totalorder %s28, 2
    %s30 = scalar_select %p29, 0, %s28
    %s31 = ssub.s32 %s18, %s30
    %s32 = ssub.s32 %s19, %s26
    %s33 = sor.u32 %s31, %s32
    %p34 = scmp.eq.s32.totalorder %s33, 0
    %s36 = sadd.s32 %s35, 1
    %s37 = scalar_select %p34, %s35, %s36
    %p40 = pneg %p34
    %p41 = scmp.eq.s32.totalorder %s11, 1
    %p42 = por %p40, %p41
    %p43 = scmp.ne.s32.totalorder %s35, %s38
    %p44 = scmp.eq.s32.totalorder %s11, 0
    %p45 = por %p43, %p44
    %p46 = scmp.ne.s32.totalorder %s35, %s38
    %p47 = scmp.eq.s32.totalorder %s16, 1
    %p48 = por %p46, %p47
    %p49 = scmp.ne.s32.totalorder %s38, %s39
    %p50 = scmp.eq.s32.totalorder %s16, 0
    %p51 = por %p49, %p50
    %p52 = scmp.ne.s32.totalorder %s38, %s39
    %p53 = scmp.eq.s32.totalorder %s17, 1
    %p54 = por %p52, %p53
    %p56 = scmp.ne.s32.totalorder %s39, %s55
    %p57 = scmp.eq.s32.totalorder %s17, 0
    %p58 = por %p56, %p57
    %s60 = sadd.s32 %s59, 1
    %p63 = scmp.eq.s32.totalorder %s11, 1
    %p64 = scmp.ne.s32.totalorder %s59, %s61
    %p65 = scmp.eq.s32.totalorder %s11, 0
    %p66 = por %p64, %p65
    %p67 = scmp.ne.s32.totalorder %s59, %s61
    %p68 = scmp.eq.s32.totalorder %s16, 1
    %p69 = por %p67, %p68
    %p70 = scmp.ne.s32.totalorder %s61, %s62
    %p71 = scmp.eq.s32.totalorder %s16, 0
    %p72 = por %p70, %p71
    %p73 = scmp.ne.s32.totalorder %s61, %s62
    %p74 = scmp.eq.s32.totalorder %s17, 1
    %p75 = por %p73, %p74
    %p77 = scmp.ne.s32.totalorder %s62, %s76
    %p78 = scmp.eq.s32.totalorder %s17, 0
    %p79 = por %p77, %p78
    %s81 = sadd.s32 %s80, 1
    %p84 = scmp.eq.s32.totalorder %s11, 1
    %p85 = scmp.ne.s32.totalorder %s80, %s82
    %p86 = scmp.eq.s32.totalorder %s11, 0
    %p87 = por %p85, %p86
    %p88 = scmp.ne.s32.totalorder %s80, %s82
    %p89 = scmp.eq.s32.totalorder %s16, 1
    %p90 = por %p88, %p89
    %p91 = scmp.ne.s32.totalorder %s82, %s83
    %p92 = scmp.eq.s32.totalorder %s16, 0
    %p93 = por %p91, %p92
    %p94 = scmp.ne.s32.totalorder %s82, %s83
    %p95 = scmp.eq.s32.totalorder %s17, 1
    %p96 = por %p94, %p95
    %p98 = scmp.ne.s32.totalorder %s83, %s97
    %p99 = scmp.eq.s32.totalorder %s17, 0
    %p100 = por %p98, %p99
    %s101 = ssub.s32 %s18, %s30
    %s102 = ssub.s32 %s19, %s26
    %s103 = sor.u32 %s101, %s102
    %p104 = scmp.eq.s32.totalorder %s103, 0
    %s106 = sadd.s32 %s105, 1
    %s107 = scalar_select %p104, %s105, %s106
    %p110 = pneg %p104
    %p111 = scmp.eq.s32.totalorder %s11, 1
    %p112 = por %p110, %p111
    %p113 = scmp.ne.s32.totalorder %s105, %s108
    %p114 = scmp.eq.s32.totalorder %s11, 0
    %p115 = por %p113, %p114
    %p116 = scmp.ne.s32.totalorder %s105, %s108
    %p117 = scmp.eq.s32.totalorder %s16, 1
    %p118 = por %p116, %p117
    %p119 = scmp.ne.s32.totalorder %s108, %s109
    %p120 = scmp.eq.s32.totalorder %s16, 0
    %p121 = por %p119, %p120
    %p122 = scmp.ne.s32.totalorder %s108, %s109
    %p123 = scmp.eq.s32.totalorder %s17, 1
    %p124 = por %p122, %p123
    %p126 = scmp.ne.s32.totalorder %s109, %s125
    %p127 = scmp.eq.s32.totalorder %s17, 0
    %p128 = por %p126, %p127
    %s129 = ssub.s32 %s18, %s30
    %s130 = ssub.s32 %s19, %s26
    %s131 = sor.u32 %s129, %s130
    %p132 = scmp.eq.s32.totalorder %s131, 0
    %s134 = sadd.s32 %s133, 1
    %s135 = scalar_select %p132, %s133, %s134
    %p138 = pneg %p132
    %p139 = scmp.eq.s32.totalorder %s11, 1
    %p140 = por %p138, %p139
    %p141 = scmp.ne.s32.totalorder %s133, %s136
    %p142 = scmp.eq.s32.totalorder %s11, 0
    %p143 = por %p141, %p142
    %p144 = scmp.ne.s32.totalorder %s133, %s136
    %p145 = scmp.eq.s32.totalorder %s16, 1
    %p146 = por %p144, %p145
    %p147 = scmp.ne.s32.totalorder %s136, %s137
    %p148 = scmp.eq.s32.totalorder %s16, 0
    %p149 = por %p147, %p148
    %p150 = scmp.ne.s32.totalorder %s136, %s137
    %p151 = scmp.eq.s32.totalorder %s17, 1
    %p152 = por %p150, %p151
    %p154 = scmp.ne.s32.totalorder %s137, %s153
    %p155 = scmp.eq.s32.totalorder %s17, 0
    %p156 = por %p154, %p155
    %p157 = scmp.le.s32.totalorder 1, %s11
    %p158 = scmp.lt.s32.totalorder %s11, 3
    %p159 = pnand %p157, %p158
    %p160 = pneg %p159
    // Predicated region
    $region9: #{sp_graph_attention.2} parent=5 // pred_check
      _
    $region10: #{sp_graph_attention.2} parent=5 // pred_check_branch
      %162 = sbr.rel (%p159) target = $region12
    $region11: #{sp_graph_attention.2} parent=5 // pred_region
      %s163 = ssub.s32 %s11, 1
      // Predicated region
      $region13: #{sp_graph_attention.2} parent=11 // pred_check
        %p164 = pneg %p72
      $region14: #{sp_graph_attention.2} parent=11 // pred_check_branch
        %166 = sbr.rel (%p164) target = $region16
      $region15: #{sp_graph_attention.2} parent=11 // pred_region
        _
      $region16: #{sp_graph_attention.2} parent=11 // pred_fallthru
        _
      // Predicated region
      $region17: #{sp_graph_attention.2} parent=11 // pred_check
        %p167 = pneg %p93
      $region18: #{sp_graph_attention.2} parent=11 // pred_check_branch
        %169 = sbr.rel (%p167) target = $region20
      $region19: #{sp_graph_attention.2} parent=11 // pred_region
        _
      $region20: #{sp_graph_attention.2} parent=11 // pred_fallthru
        _
    $region12: #{sp_graph_attention.2} parent=5 // pred_fallthru
      _
    %p170 = scmp.lt.s32.totalorder %s11, 2
    // Predicated region
    $region21: #{sp_graph_attention.2} parent=5 // pred_check
      %p171 = pneg %p170
    $region22: #{sp_graph_attention.2} parent=5 // pred_check_branch
      %173 = sbr.rel (%p171) target = $region24
    $region23: #{sp_graph_attention.2} parent=5 // pred_region
      // Predicated region
      $region25: #{sp_graph_attention.2} parent=23 // pred_check
        %p174 = pneg %p45
      $region26: #{sp_graph_attention.2} parent=23 // pred_check_branch
        %176 = sbr.rel (%p174) target = $region28
      $region27: #{sp_graph_attention.2} parent=23 // pred_region
        %s177 = smul.u32 16, %s19
        %p178 = scmp.lt.s32.totalorder %s18, 1
        %s179 = scalar_select %p178, %s18, 1
        %p180 = scmp.lt.s32.totalorder %s177, 15
        %s181 = scalar_select %p180, %s177, 15
        %s182 = smul.addr %s179, 16
        %s183 = sadd.s32 %s181, %s182
        %s184 = smul.addr %s183, 8
        %s185 = scalar_lea.vmem %s0, %s184
        %s186 = smul.u32 16, %s19
      $region28: #{sp_graph_attention.2} parent=23 // pred_fallthru
        _
    $region24: #{sp_graph_attention.2} parent=5 // pred_fallthru
      _
    %p187 = scmp.le.s32.totalorder 1, %s11
    %p188 = scmp.lt.s32.totalorder %s11, 3
    %p189 = pnand %p187, %p188
    %p190 = pneg %p189
    // Predicated region
    $region29: #{sp_graph_attention.2} parent=5 // pred_check
      _
    $region30: #{sp_graph_attention.2} parent=5 // pred_check_branch
      %192 = sbr.rel (%p189) target = $region32
    $region31: #{sp_graph_attention.2} parent=5 // pred_region
      %s193 = ssub.s32 %s11, 1
      %s194 = smul.u32 16, %s21
      %p195 = scmp.lt.s32.totalorder %s20, 1
      %s196 = scalar_select %p195, %s20, 1
      %p197 = scmp.lt.s32.totalorder %s194, 15
      %s198 = scalar_select %p197, %s194, 15
      %s199 = smul.addr %s196, 16
      %s200 = sadd.s32 %s198, %s199
      %s201 = smul.addr %s200, 8
      %s202 = scalar_lea.vmem %s0, %s201
      %p203 = pneg %p51
      %p204 = pneg %p48
      %p205 = pneg %p72
      %p206 = pneg %p69
      %p207 = pneg %p93
      %p208 = pneg %p90
      %p209 = pneg %p121
      %p210 = pneg %p118
      %s211 = smul.u32 16, %s21
      %p212 = scmp.lt.s32.totalorder %s20, 1
      %s213 = scalar_select %p212, %s20, 1
      %p214 = scmp.lt.s32.totalorder %s211, 15
      %s215 = scalar_select %p214, %s211, 15
      %s216 = smul.addr %s213, 16
      %s217 = sadd.s32 %s215, %s216
      %s218 = smul.addr %s217, 4
      %s219 = scalar_lea.vmem %s3, %s218
      %p220 = pneg %p149
      %p221 = pneg %p146
      %s222 = smul.u32 16, %s21
      %p223 = scmp.lt.s32.totalorder %s20, 1
      %s224 = scalar_select %p223, %s20, 1
      %p225 = scmp.lt.s32.totalorder %s222, 15
      %s226 = scalar_select %p225, %s222, 15
      %s227 = smul.addr %s224, 16
      %s228 = sadd.s32 %s226, %s227
      %s229 = smul.addr %s228, 8
      %s230 = scalar_lea.vmem %s4, %s229
      %s231 = smul.u32 16, %s21
      %p232 = scmp.lt.s32.totalorder %s20, 1
      %s233 = scalar_select %p232, %s20, 1
      %p234 = scmp.lt.s32.totalorder %s231, 15
      %s235 = scalar_select %p234, %s231, 15
      %s236 = smul.addr %s233, 16
      %s237 = sadd.s32 %s235, %s236
      %s238 = smul.addr %s237, 8
      %s239 = scalar_lea.vmem %s0, %s238
      %s240 = smul.u32 16, %s21
      %s241 = smul.u32 16, %s21
      %p242 = scmp.lt.s32.totalorder %s20, 1
      %s243 = scalar_select %p242, %s20, 1
      %p244 = scmp.lt.s32.totalorder %s241, 15
      %s245 = scalar_select %p244, %s241, 15
      %s246 = smul.addr %s243, 16
      %s247 = sadd.s32 %s245, %s246
      %s248 = smul.addr %s247, 4
      %s249 = scalar_lea.vmem %s3, %s248
      %s250 = smul.u32 16, %s21
      %s251 = smul.u32 16, %s21
      %p252 = scmp.lt.s32.totalorder %s20, 1
      %s253 = scalar_select %p252, %s20, 1
      %p254 = scmp.lt.s32.totalorder %s251, 15
      %s255 = scalar_select %p254, %s251, 15
      %s256 = smul.addr %s253, 16
      %s257 = sadd.s32 %s255, %s256
      %s258 = smul.addr %s257, 8
      %s259 = scalar_lea.vmem %s4, %s258
      %s260 = smul.u32 16, %s21
      %v261 = vld [vmem:[%s239] sm:$0xff]
      %v262 = vld [vmem:[%s239 + $0x8] sm:$0xff]
      %v263 = vld [vmem:[%s239 + $0x10] sm:$0xff]
      %v264 = vld [vmem:[%s239 + $0x18] sm:$0xff]
      %v265 = vld [vmem:[%s239 + $0x20] sm:$0xff]
      %v266 = vld [vmem:[%s239 + $0x28] sm:$0xff]
      %v267 = vld [vmem:[%s239 + $0x30] sm:$0xff]
      %v268 = vld [vmem:[%s239 + $0x38] sm:$0xff]
      %v269 = vld [vmem:[%s239 + $0x40] sm:$0xff]
      %v270 = vld [vmem:[%s239 + $0x48] sm:$0xff]
      %v271 = vld [vmem:[%s239 + $0x50] sm:$0xff]
      %v272 = vld [vmem:[%s239 + $0x58] sm:$0xff]
      %v273 = vld [vmem:[%s239 + $0x60] sm:$0xff]
      %v274 = vld [vmem:[%s239 + $0x68] sm:$0xff]
      %v275 = vld [vmem:[%s239 + $0x70] sm:$0xff]
      %v276 = vld [vmem:[%s239 + $0x78] sm:$0xff]
      %v277 = vld [vmem:[%s1] sm:$0xff]
      %v278 = vld [vmem:[%s1 + $0x8] sm:$0xff]
      %vm279 = vcmask 130048
      %v281 = vsel %vm279, %v261, 0
      %v284 = vsel %vm279, %v262, 0
      %v287 = vsel %vm279, %v263, 0
      %v290 = vsel %vm279, %v264, 0
      %v293 = vsel %vm279, %v265, 0
      %v296 = vsel %vm279, %v266, 0
      %v299 = vsel %vm279, %v267, 0
      %v302 = vsel %vm279, %v268, 0
      %v305 = vsel %vm279, %v269, 0
      %v308 = vsel %vm279, %v270, 0
      %v311 = vsel %vm279, %v271, 0
      %v314 = vsel %vm279, %v272, 0
      %v317 = vsel %vm279, %v273, 0
      %v320 = vsel %vm279, %v274, 0
      %v323 = vsel %vm279, %v275, 0
      %v326 = vsel %vm279, %v276, 0
      %328 = vmatprep.subr.mxu0 0.0
      %329 = vmatpush1.msra.mxu0 %v277
      %330 = vmatprep.subr.mxu0 0.0
      %331 = vmatpush1.msra.mxu0 %v278
      %332 = vmatprep.subr.mxu0 0.0
      %333 = vmatpush1.msra.mxu0 0.0
      %334 = vmatprep.subr.mxu0 0.0
      %335 = vmatpush1.msra.mxu0 0.0
      %336 = vmatprep.subr.mxu0 0.0
      %337 = vmatpush1.msra.mxu0 0.0
      %338 = vmatprep.subr.mxu0 0.0
      %339 = vmatpush1.msra.mxu0 0.0
      %340 = vmatprep.subr.mxu0 0.0
      %341 = vmatpush1.msra.mxu0 0.0
      %342 = vmatprep.subr.mxu0 0.0
      %343 = vmatpush1.msra.mxu0 0.0
      %344 = vmatprep.subr.mxu0 0.0
      %345 = vmatpush1.msra.mxu0 0.0
      %346 = vmatprep.subr.mxu0 0.0
      %347 = vmatpush1.msra.mxu0 0.0
      %348 = vmatprep.subr.mxu0 0.0
      %349 = vmatpush1.msra.mxu0 0.0
      %350 = vmatprep.subr.mxu0 0.0
      %351 = vmatpush1.msra.mxu0 0.0
      %352 = vmatprep.subr.mxu0 0.0
      %353 = vmatpush1.msra.mxu0 0.0
      %354 = vmatprep.subr.mxu0 0.0
      %355 = vmatpush1.msra.mxu0 0.0
      %356 = vmatprep.subr.mxu0 0.0
      %357 = vmatpush1.msra.mxu0 0.0
      %358 = vmatprep.subr.mxu0 0.0
      %359 = vmatpush1.msra.mxu0 0.0
      %360 = vmatprep.subr.mxu0 0.0
      %361 = vmatpush1.msra.mxu0 0.0
      %362 = vmatprep.subr.mxu0 0.0
      %363 = vmatpush1.msra.mxu0 0.0
      %364 = vmatprep.subr.mxu0 0.0
      %365 = vmatpush1.msra.mxu0 0.0
      %366 = vmatprep.subr.mxu0 0.0
      %367 = vmatpush1.msra.mxu0 0.0
      %368 = vmatprep.subr.mxu0 0.0
      %369 = vmatpush1.msra.mxu0 0.0
      %370 = vmatprep.subr.mxu0 0.0
      %371 = vmatpush1.msra.mxu0 0.0
      %372 = vmatprep.subr.mxu0 0.0
      %373 = vmatpush1.msra.mxu0 0.0
      %374 = vmatprep.subr.mxu0 0.0
      %375 = vmatpush1.msra.mxu0 0.0
      %376 = vmatprep.subr.mxu0 0.0
      %377 = vmatpush1.msra.mxu0 0.0
      %378 = vmatprep.subr.mxu0 0.0
      %379 = vmatpush1.msra.mxu0 0.0
      %380 = vmatprep.subr.mxu0 0.0
      %381 = vmatpush1.msra.mxu0 0.0
      %382 = vmatprep.subr.mxu0 0.0
      %383 = vmatpush1.msra.mxu0 0.0
      %384 = vmatprep.subr.mxu0 0.0
      %385 = vmatpush1.msra.mxu0 0.0
      %386 = vmatprep.subr.mxu0 0.0
      %387 = vmatpush1.msra.mxu0 0.0
      %388 = vmatprep.subr.mxu0 0.0
      %389 = vmatpush1.msra.mxu0 0.0
      %390 = vmatprep.subr.mxu0 0.0
      %391 = vmatpush1.msra.mxu0 0.0
      %392 = vmatprep.mubr.f32.mxu0 0.0
      %393 = vmatmul.mubr.f32.gmra.mrb[0].mxu0 %v281
      %v394 = vpop.f32.mrb[0].mxu0
      %v395 = vadd.f32 0.0, %v394
      %v396 = vpop.f32.mrb[0].mxu0
      %397 = vmatprep.mubr.f32.mxu0 0.0
      %398 = vmatmul.mubr.f32.gmra.mrb[0].mxu0 %v284
      %v399 = vpop.f32.mrb[0].mxu0
      %v400 = vadd.f32 0.0, %v399
      %v401 = vpop.f32.mrb[0].mxu0
      %402 = vmatprep.mubr.f32.mxu0 0.0
      %403 = vmatmul.mubr.f32.gmra.mrb[0].mxu0 %v287
      %v404 = vpop.f32.mrb[0].mxu0
      %v405 = vadd.f32 0.0, %v404
      %v406 = vpop.f32.mrb[0].mxu0
      %407 = vmatprep.mubr.f32.mxu0 0.0
      %408 = vmatmul.mubr.f32.gmra.mrb[0].mxu0 %v290
      %v409 = vpop.f32.mrb[0].mxu0
      %v410 = vadd.f32 0.0, %v409
      %v411 = vpop.f32.mrb[0].mxu0
      %412 = vmatprep.mubr.f32.mxu0 0.0
      %413 = vmatmul.mubr.f32.gmra.mrb[0].mxu0 %v293
      %v414 = vpop.f32.mrb[0].mxu0
      %v415 = vadd.f32 0.0, %v414
      %v416 = vpop.f32.mrb[0].mxu0
      %417 = vmatprep.mubr.f32.mxu0 0.0
      %418 = vmatmul.mubr.f32.gmra.mrb[0].mxu0 %v296
      %v419 = vpop.f32.mrb[0].mxu0
      %v420 = vadd.f32 0.0, %v419
      %v421 = vpop.f32.mrb[0].mxu0
      %422 = vmatprep.mubr.f32.mxu0 0.0
      %423 = vmatmul.mubr.f32.gmra.mrb[0].mxu0 %v299
      %v424 = vpop.f32.mrb[0].mxu0
      %v425 = vadd.f32 0.0, %v424
      %v426 = vpop.f32.mrb[0].mxu0
      %427 = vmatprep.mubr.f32.mxu0 0.0
      %428 = vmatmul.mubr.f32.gmra.mrb[0].mxu0 %v302
      %v429 = vpop.f32.mrb[0].mxu0
      %v430 = vadd.f32 0.0, %v429
      %v431 = vpop.f32.mrb[0].mxu0
      %432 = vmatprep.mubr.f32.mxu0 0.0
      %433 = vmatmul.mubr.f32.gmra.mrb[0].mxu0 %v305
      %v434 = vpop.f32.mrb[0].mxu0
      %v435 = vadd.f32 0.0, %v434
      %v436 = vpop.f32.mrb[0].mxu0
      %437 = vmatprep.mubr.f32.mxu0 0.0
      %438 = vmatmul.mubr.f32.gmra.mrb[0].mxu0 %v308
      %v439 = vpop.f32.mrb[0].mxu0
      %v440 = vadd.f32 0.0, %v439
      %v441 = vpop.f32.mrb[0].mxu0
      %442 = vmatprep.mubr.f32.mxu0 0.0
      %443 = vmatmul.mubr.f32.gmra.mrb[0].mxu0 %v311
      %v444 = vpop.f32.mrb[0].mxu0
      %v445 = vadd.f32 0.0, %v444
      %v446 = vpop.f32.mrb[0].mxu0
      %447 = vmatprep.mubr.f32.mxu0 0.0
      %448 = vmatmul.mubr.f32.gmra.mrb[0].mxu0 %v314
      %v449 = vpop.f32.mrb[0].mxu0
      %v450 = vadd.f32 0.0, %v449
      %v451 = vpop.f32.mrb[0].mxu0
      %452 = vmatprep.mubr.f32.mxu0 0.0
      %453 = vmatmul.mubr.f32.gmra.mrb[0].mxu0 %v317
      %v454 = vpop.f32.mrb[0].mxu0
      %v455 = vadd.f32 0.0, %v454
      %v456 = vpop.f32.mrb[0].mxu0
      %457 = vmatprep.mubr.f32.mxu0 0.0
      %458 = vmatmul.mubr.f32.gmra.mrb[0].mxu0 %v320
      %v459 = vpop.f32.mrb[0].mxu0
      %v460 = vadd.f32 0.0, %v459
      %v461 = vpop.f32.mrb[0].mxu0
      %462 = vmatprep.mubr.f32.mxu0 0.0
      %463 = vmatmul.mubr.f32.gmra.mrb[0].mxu0 %v323
      %v464 = vpop.f32.mrb[0].mxu0
      %v465 = vadd.f32 0.0, %v464
      %v466 = vpop.f32.mrb[0].mxu0
      %467 = vmatprep.mubr.f32.mxu0 0.0
      %468 = vmatmul.mubr.f32.gmra.mrb[0].mxu0 %v326
      %v469 = vpop.f32.mrb[0].mxu0
      %v470 = vadd.f32 0.0, %v469
      %v471 = vpop.f32.mrb[0].mxu0
      %472 = vdwg.mxu0
      %v473 = vpack.c.bf16 %v400, %v395
      %v474 = vpack.c.bf16 %v410, %v405
      %v475 = vpack.c.bf16 %v420, %v415
      %v476 = vpack.c.bf16 %v430, %v425
      %v477 = vpack.c.bf16 %v440, %v435
      %v478 = vpack.c.bf16 %v450, %v445
      %v479 = vpack.c.bf16 %v460, %v455
      %v480 = vpack.c.bf16 %v470, %v465
      %v489 = vunpack.c.l.b16 %v473
      %v490 = vunpack.c.h.b16 %v473
      %v491 = vunpack.c.l.b16 %v474
      %v492 = vunpack.c.h.b16 %v474
      %v493 = vunpack.c.l.b16 %v475
      %v494 = vunpack.c.h.b16 %v475
      %v495 = vunpack.c.l.b16 %v476
      %v496 = vunpack.c.h.b16 %v476
      %v497 = vunpack.c.l.b16 %v477
      %v498 = vunpack.c.h.b16 %v477
      %v499 = vunpack.c.l.b16 %v478
      %v500 = vunpack.c.h.b16 %v478
      %v501 = vunpack.c.l.b16 %v479
      %v502 = vunpack.c.h.b16 %v479
      %v503 = vunpack.c.l.b16 %v480
      %v504 = vunpack.c.h.b16 %v480
      %v505 = vpack.c.b16 %v489, %v489
      %v506 = vpack.c.b16 %v490, %v490
      %v507 = vpack.c.b16 %v491, %v491
      %v508 = vpack.c.b16 %v492, %v492
      %v509 = vpack.c.b16 %v493, %v493
      %v510 = vpack.c.b16 %v494, %v494
      %v511 = vpack.c.b16 %v495, %v495
      %v512 = vpack.c.b16 %v496, %v496
      %v513 = vpack.c.b16 %v497, %v497
      %v514 = vpack.c.b16 %v498, %v498
      %v515 = vpack.c.b16 %v499, %v499
      %v516 = vpack.c.b16 %v500, %v500
      %v517 = vpack.c.b16 %v501, %v501
      %v518 = vpack.c.b16 %v502, %v502
      %v519 = vpack.c.b16 %v503, %v503
      %v520 = vpack.c.b16 %v504, %v504
      %537 = vst [vmem:[%s249] sm:$0xf] %v505
      %538 = vst [vmem:[%s249 + $0x4] sm:$0xf] %v506
      %539 = vst [vmem:[%s249 + $0x8] sm:$0xf] %v507
      %540 = vst [vmem:[%s249 + $0xc] sm:$0xf] %v508
      %541 = vst [vmem:[%s249 + $0x10] sm:$0xf] %v509
      %542 = vst [vmem:[%s249 + $0x14] sm:$0xf] %v510
      %543 = vst [vmem:[%s249 + $0x18] sm:$0xf] %v511
      %544 = vst [vmem:[%s249 + $0x1c] sm:$0xf] %v512
      %545 = vst [vmem:[%s249 + $0x20] sm:$0xf] %v513
      %546 = vst [vmem:[%s249 + $0x24] sm:$0xf] %v514
      %547 = vst [vmem:[%s249 + $0x28] sm:$0xf] %v515
      %548 = vst [vmem:[%s249 + $0x2c] sm:$0xf] %v516
      %549 = vst [vmem:[%s249 + $0x30] sm:$0xf] %v517
      %550 = vst [vmem:[%s249 + $0x34] sm:$0xf] %v518
      %551 = vst [vmem:[%s249 + $0x38] sm:$0xf] %v519
      %552 = vst [vmem:[%s249 + $0x3c] sm:$0xf] %v520
      %v553 = vld [vmem:[%s2] sm:$0xff]
      %v554 = vld [vmem:[%s2 + $0x8] sm:$0xff]
      %555 = vmatprep.subr.mxu0 0.0
      %556 = vmatpush1.msra.mxu0 %v553
      %557 = vmatprep.subr.mxu0 0.0
      %558 = vmatpush1.msra.mxu0 %v554
      %559 = vmatprep.subr.mxu0 0.0
      %560 = vmatpush1.msra.mxu0 0.0
      %561 = vmatprep.subr.mxu0 0.0
      %562 = vmatpush1.msra.mxu0 0.0
      %563 = vmatprep.subr.mxu0 0.0
      %564 = vmatpush1.msra.mxu0 0.0
      %565 = vmatprep.subr.mxu0 0.0
      %566 = vmatpush1.msra.mxu0 0.0
      %567 = vmatprep.subr.mxu0 0.0
      %568 = vmatpush1.msra.mxu0 0.0
      %569 = vmatprep.subr.mxu0 0.0
      %570 = vmatpush1.msra.mxu0 0.0
      %571 = vmatprep.subr.mxu0 0.0
      %572 = vmatpush1.msra.mxu0 0.0
      %573 = vmatprep.subr.mxu0 0.0
      %574 = vmatpush1.msra.mxu0 0.0
      %575 = vmatprep.subr.mxu0 0.0
      %576 = vmatpush1.msra.mxu0 0.0
      %577 = vmatprep.subr.mxu0 0.0
      %578 = vmatpush1.msra.mxu0 0.0
      %579 = vmatprep.subr.mxu0 0.0
      %580 = vmatpush1.msra.mxu0 0.0
      %581 = vmatprep.subr.mxu0 0.0
      %582 = vmatpush1.msra.mxu0 0.0
      %583 = vmatprep.subr.mxu0 0.0
      %584 = vmatpush1.msra.mxu0 0.0
      %585 = vmatprep.subr.mxu0 0.0
      %586 = vmatpush1.msra.mxu0 0.0
      %587 = vmatprep.subr.mxu0 0.0
      %588 = vmatpush1.msra.mxu0 0.0
      %589 = vmatprep.subr.mxu0 0.0
      %590 = vmatpush1.msra.mxu0 0.0
      %591 = vmatprep.subr.mxu0 0.0
      %592 = vmatpush1.msra.mxu0 0.0
      %593 = vmatprep.subr.mxu0 0.0
      %594 = vmatpush1.msra.mxu0 0.0
      %595 = vmatprep.subr.mxu0 0.0
      %596 = vmatpush1.msra.mxu0 0.0
      %597 = vmatprep.subr.mxu0 0.0
      %598 = vmatpush1.msra.mxu0 0.0
      %599 = vmatprep.subr.mxu0 0.0
      %600 = vmatpush1.msra.mxu0 0.0
      %601 = vmatprep.subr.mxu0 0.0
      %602 = vmatpush1.msra.mxu0 0.0
      %603 = vmatprep.subr.mxu0 0.0
      %604 = vmatpush1.msra.mxu0 0.0
      %605 = vmatprep.subr.mxu0 0.0
      %606 = vmatpush1.msra.mxu0 0.0
      %607 = vmatprep.subr.mxu0 0.0
      %608 = vmatpush1.msra.mxu0 0.0
      %609 = vmatprep.subr.mxu0 0.0
      %610 = vmatpush1.msra.mxu0 0.0
      %611 = vmatprep.subr.mxu0 0.0
      %612 = vmatpush1.msra.mxu0 0.0
      %613 = vmatprep.subr.mxu0 0.0
      %614 = vmatpush1.msra.mxu0 0.0
      %615 = vmatprep.subr.mxu0 0.0
      %616 = vmatpush1.msra.mxu0 0.0
      %617 = vmatprep.subr.mxu0 0.0
      %618 = vmatpush1.msra.mxu0 0.0
      %619 = vmatprep.mubr.f32.mxu0 0.0
      %620 = vmatmul.mubr.f32.gmra.mrb[0].mxu0 %v281
      %v621 = vpop.f32.mrb[0].mxu0
      %v622 = vadd.f32 0.0, %v621
      %v623 = vpop.f32.mrb[0].mxu0
      %624 = vmatprep.mubr.f32.mxu0 0.0
      %625 = vmatmul.mubr.f32.gmra.mrb[0].mxu0 %v284
      %v626 = vpop.f32.mrb[0].mxu0
      %v627 = vadd.f32 0.0, %v626
      %v628 = vpop.f32.mrb[0].mxu0
      %629 = vmatprep.mubr.f32.mxu0 0.0
      %630 = vmatmul.mubr.f32.gmra.mrb[0].mxu0 %v287
      %v631 = vpop.f32.mrb[0].mxu0
      %v632 = vadd.f32 0.0, %v631
      %v633 = vpop.f32.mrb[0].mxu0
      %634 = vmatprep.mubr.f32.mxu0 0.0
      %635 = vmatmul.mubr.f32.gmra.mrb[0].mxu0 %v290
      %v636 = vpop.f32.mrb[0].mxu0
      %v637 = vadd.f32 0.0, %v636
      %v638 = vpop.f32.mrb[0].mxu0
      %639 = vmatprep.mubr.f32.mxu0 0.0
      %640 = vmatmul.mubr.f32.gmra.mrb[0].mxu0 %v293
      %v641 = vpop.f32.mrb[0].mxu0
      %v642 = vadd.f32 0.0, %v641
      %v643 = vpop.f32.mrb[0].mxu0
      %644 = vmatprep.mubr.f32.mxu0 0.0
      %645 = vmatmul.mubr.f32.gmra.mrb[0].mxu0 %v296
      %v646 = vpop.f32.mrb[0].mxu0
      %v647 = vadd.f32 0.0, %v646
      %v648 = vpop.f32.mrb[0].mxu0
      %649 = vmatprep.mubr.f32.mxu0 0.0
      %650 = vmatmul.mubr.f32.gmra.mrb[0].mxu0 %v299
      %v651 = vpop.f32.mrb[0].mxu0
      %v652 = vadd.f32 0.0, %v651
      %v653 = vpop.f32.mrb[0].mxu0
      %654 = vmatprep.mubr.f32.mxu0 0.0
      %655 = vmatmul.mubr.f32.gmra.mrb[0].mxu0 %v302
      %v656 = vpop.f32.mrb[0].mxu0
      %v657 = vadd.f32 0.0, %v656
      %v658 = vpop.f32.mrb[0].mxu0
      %659 = vmatprep.mubr.f32.mxu0 0.0
      %660 = vmatmul.mubr.f32.gmra.mrb[0].mxu0 %v305
      %v661 = vpop.f32.mrb[0].mxu0
      %v662 = vadd.f32 0.0, %v661
      %v663 = vpop.f32.mrb[0].mxu0
      %664 = vmatprep.mubr.f32.mxu0 0.0
      %665 = vmatmul.mubr.f32.gmra.mrb[0].mxu0 %v308
      %v666 = vpop.f32.mrb[0].mxu0
      %v667 = vadd.f32 0.0, %v666
      %v668 = vpop.f32.mrb[0].mxu0
      %669 = vmatprep.mubr.f32.mxu0 0.0
      %670 = vmatmul.mubr.f32.gmra.mrb[0].mxu0 %v311
      %v671 = vpop.f32.mrb[0].mxu0
      %v672 = vadd.f32 0.0, %v671
      %v673 = vpop.f32.mrb[0].mxu0
      %674 = vmatprep.mubr.f32.mxu0 0.0
      %675 = vmatmul.mubr.f32.gmra.mrb[0].mxu0 %v314
      %v676 = vpop.f32.mrb[0].mxu0
      %v677 = vadd.f32 0.0, %v676
      %v678 = vpop.f32.mrb[0].mxu0
      %679 = vmatprep.mubr.f32.mxu0 0.0
      %680 = vmatmul.mubr.f32.gmra.mrb[0].mxu0 %v317
      %v681 = vpop.f32.mrb[0].mxu0
      %v682 = vadd.f32 0.0, %v681
      %v683 = vpop.f32.mrb[0].mxu0
      %684 = vmatprep.mubr.f32.mxu0 0.0
      %685 = vmatmul.mubr.f32.gmra.mrb[0].mxu0 %v320
      %v686 = vpop.f32.mrb[0].mxu0
      %v687 = vadd.f32 0.0, %v686
      %v688 = vpop.f32.mrb[0].mxu0
      %689 = vmatprep.mubr.f32.mxu0 0.0
      %690 = vmatmul.mubr.f32.gmra.mrb[0].mxu0 %v323
      %v691 = vpop.f32.mrb[0].mxu0
      %v692 = vadd.f32 0.0, %v691
      %v693 = vpop.f32.mrb[0].mxu0
      %694 = vmatprep.mubr.f32.mxu0 0.0
      %695 = vmatmul.mubr.f32.gmra.mrb[0].mxu0 %v326
      %v696 = vpop.f32.mrb[0].mxu0
      %v697 = vadd.f32 0.0, %v696
      %v698 = vpop.f32.mrb[0].mxu0
      %699 = vdwg.mxu0
      %vm700 = vcmask 31744
      %701 = vst.msk [vmem:[%s259] sm:$0xff] %vm700, %v622
      %702 = vst.msk [vmem:[%s259 + $0x8] sm:$0xff] %vm700, %v627
      %703 = vst.msk [vmem:[%s259 + $0x10] sm:$0xff] %vm700, %v632
      %704 = vst.msk [vmem:[%s259 + $0x18] sm:$0xff] %vm700, %v637
      %705 = vst.msk [vmem:[%s259 + $0x20] sm:$0xff] %vm700, %v642
      %706 = vst.msk [vmem:[%s259 + $0x28] sm:$0xff] %vm700, %v647
      %707 = vst.msk [vmem:[%s259 + $0x30] sm:$0xff] %vm700, %v652
      %708 = vst.msk [vmem:[%s259 + $0x38] sm:$0xff] %vm700, %v657
      %709 = vst.msk [vmem:[%s259 + $0x40] sm:$0xff] %vm700, %v662
      %710 = vst.msk [vmem:[%s259 + $0x48] sm:$0xff] %vm700, %v667
      %711 = vst.msk [vmem:[%s259 + $0x50] sm:$0xff] %vm700, %v672
      %712 = vst.msk [vmem:[%s259 + $0x58] sm:$0xff] %vm700, %v677
      %713 = vst.msk [vmem:[%s259 + $0x60] sm:$0xff] %vm700, %v682
      %714 = vst.msk [vmem:[%s259 + $0x68] sm:$0xff] %vm700, %v687
      %715 = vst.msk [vmem:[%s259 + $0x70] sm:$0xff] %vm700, %v692
      %716 = vst.msk [vmem:[%s259 + $0x78] sm:$0xff] %vm700, %v697
      %s717 = smul.u32 16, %s21
      %p718 = scmp.lt.s32.totalorder %s20, 1
      %s719 = scalar_select %p718, %s20, 1
      %p720 = scmp.lt.s32.totalorder %s717, 15
      %s721 = scalar_select %p720, %s717, 15
      %s722 = smul.addr %s719, 16
      %s723 = sadd.s32 %s721, %s722
      %s724 = smul.addr %s723, 4
      %s725 = scalar_lea.vmem %s3, %s724
      %s726 = smul.u32 16, %s21
      %p727 = scmp.lt.s32.totalorder %s20, 1
      %s728 = scalar_select %p727, %s20, 1
      %p729 = scmp.lt.s32.totalorder %s726, 15
      %s730 = scalar_select %p729, %s726, 15
      %s731 = smul.addr %s728, 16
      %s732 = sadd.s32 %s730, %s731
      %s733 = smul.addr %s732, 8
      %s734 = scalar_lea.vmem %s4, %s733
      // Predicated region
      $region33: #{sp_graph_attention.2} parent=31 // pred_check
        %p735 = pneg %p118
      $region34: #{sp_graph_attention.2} parent=31 // pred_check_branch
        %737 = sbr.rel (%p735) target = $region36
      $region35: #{sp_graph_attention.2} parent=31 // pred_region
        %s738 = smul.u32 16, %s21
      $region36: #{sp_graph_attention.2} parent=31 // pred_fallthru
        _
      // Predicated region
      $region37: #{sp_graph_attention.2} parent=31 // pred_check
        %p739 = pneg %p146
      $region38: #{sp_graph_attention.2} parent=31 // pred_check_branch
        %741 = sbr.rel (%p739) target = $region40
      $region39: #{sp_graph_attention.2} parent=31 // pred_region
        %s742 = smul.u32 16, %s21
      $region40: #{sp_graph_attention.2} parent=31 // pred_fallthru
        _
    $region32: #{sp_graph_attention.2} parent=5 // pred_fallthru
      _
    %p743 = scmp.le.s32.totalorder 2, %s11
    // Predicated region
    $region41: #{sp_graph_attention.2} parent=5 // pred_check
      %p744 = pneg %p743
    $region42: #{sp_graph_attention.2} parent=5 // pred_check_branch
      %746 = sbr.rel (%p744) target = $region44
    $region43: #{sp_graph_attention.2} parent=5 // pred_region
      %s747 = ssub.s32 %s11, 2
      // Predicated region
      $region45: #{sp_graph_attention.2} parent=43 // pred_check
        %p748 = pneg %p124
      $region46: #{sp_graph_attention.2} parent=43 // pred_check_branch
        %750 = sbr.rel (%p748) target = $region48
      $region47: #{sp_graph_attention.2} parent=43 // pred_region
        %s751 = smul.u32 16, %s23
        %p752 = scmp.lt.s32.totalorder %s22, 1
        %s753 = scalar_select %p752, %s22, 1
        %p754 = scmp.lt.s32.totalorder %s751, 15
        %s755 = scalar_select %p754, %s751, 15
        %s756 = smul.addr %s753, 16
        %s757 = sadd.s32 %s755, %s756
        %s758 = smul.addr %s757, 4
        %s759 = scalar_lea.vmem %s3, %s758
      $region48: #{sp_graph_attention.2} parent=43 // pred_fallthru
        _
      // Predicated region
      $region49: #{sp_graph_attention.2} parent=43 // pred_check
        %p760 = pneg %p152
      $region50: #{sp_graph_attention.2} parent=43 // pred_check_branch
        %762 = sbr.rel (%p760) target = $region52
      $region51: #{sp_graph_attention.2} parent=43 // pred_region
        %s763 = smul.u32 16, %s23
        %p764 = scmp.lt.s32.totalorder %s22, 1
        %s765 = scalar_select %p764, %s22, 1
        %p766 = scmp.lt.s32.totalorder %s763, 15
        %s767 = scalar_select %p766, %s763, 15
        %s768 = smul.addr %s765, 16
        %s769 = sadd.s32 %s767, %s768
        %s770 = smul.addr %s769, 8
        %s771 = scalar_lea.vmem %s4, %s770
      $region52: #{sp_graph_attention.2} parent=43 // pred_fallthru
        _
    $region44: #{sp_graph_attention.2} parent=5 // pred_fallthru
      _
  $region6: #{sp_graph_attention.2} parent=0 // loop_footer
    %s15 = sadd.s32 1, %s11
  $region7: #{sp_graph_attention.2} parent=0 // loop_footer_branch
    %10 = sbr.rel target = $region3
  $region8: #{sp_graph_attention.2} parent=0 // loop_exit
    _

// kernel: sp_graph_attention.3
$region0: #{sp_graph_attention.3}
  #allocation0 [shape = 'u32[]', space=smem, size = 0x4, offset = 0x4, fixed_abs, tag = 'smem constant byte address 0x4 - core index']
  #allocation1 [shape = 'u32[144,128]{1,0:T(1,128)}', space=vmem, size = 0x12000, scoped, tag = 'internal scratch']
  #allocation2 [shape = 'f32[128,128]{1,0:T(8,128)}', space=vmem, size = 0x10000, scoped, tag = 'scratch operand']
  %s0 = inlined_call_operand.vmem [shape: s8[2,128,128], index: 0, kind: input, shape index: {}]
  %s1 = inlined_call_operand.vmem [shape: bf16[2,128,128], index: 1, kind: input, shape index: {}]
  %s2 = inlined_call_operand.vmem [shape: f32[2,128,2], index: 2, kind: input, shape index: {}]
  %s3 = inlined_call_operand.vmem [shape: f32[2,2,128], index: 3, kind: input, shape index: {}]
  %s4 = inlined_call_operand.vmem [shape: f32[2,128,128], index: 4, kind: output, shape index: {}]
  %s5 = sld [smem:[#allocation0]]
  $region57: #{sp_graph_attention.3} parent=0
    _
  %s7 = ssub.s32 1, %s5
  %s8 = scalar_select 0, %s7, %s5
  loop: start=0, step=1, limit=4
  $region2: #{sp_graph_attention.3} parent=0 // loop_pre_header
    _
  $region3: #{sp_graph_attention.3} parent=0 // loop_header
    %s10 = sphi 0, %s14
    %p11 = scmp.ge.s32.totalorder %s10, 4
    %s17 = sphi 0, %s36
    %s18 = sphi 0, %s32
    %s19 = sphi 0, %s28
    %s20 = sphi 0, %s17
    %s21 = sphi 0, %s18
    %s22 = sphi 0, %s19
    %s23 = sphi 0, %s20
    %s24 = sphi 0, %s21
    %s25 = sphi 0, %s22
    %s43 = sphi 0, %s45
    %s46 = sphi 0, %s43
    %s47 = sphi 0, %s46
    %s63 = sphi 0, %s47
    %s69 = sphi 0, %s71
    %s72 = sphi 0, %s69
    %s73 = sphi 0, %s72
    %s89 = sphi 0, %s73
    %s97 = sphi 0, %s99
    %s100 = sphi 0, %s97
    %s101 = sphi 0, %s100
    %s117 = sphi 0, %s101
    %s125 = sphi 0, %s127
    %s128 = sphi 0, %s125
    %s129 = sphi 0, %s128
    %s145 = sphi 0, %s129
    %s153 = sphi 0, %s155
    %s156 = sphi 0, %s153
    %s157 = sphi 0, %s156
    %s173 = sphi 0, %s157
  $region4: #{sp_graph_attention.3} parent=0 // loop_header_branch
    %13 = sbr.rel (%p11) target = $region8
  $region5: #{sp_graph_attention.3} parent=0 // loop_body
    %s15 = ssub.s32 %s10, 1
    %s16 = ssub.s32 %s10, 2
    %s26 = sadd.s32 1, %s19
    %p27 = scmp.ge.s32.totalorder %s26, 1
    %s28 = scalar_select %p27, 0, %s26
    %s29 = sadd.s32 1, %s18
    %s30 = scalar_select %p27, %s29, %s18
    %p31 = scmp.ge.s32.totalorder %s30, 1
    %s32 = scalar_select %p31, 0, %s30
    %s33 = sadd.s32 1, %s17
    %s34 = scalar_select %p31, %s33, %s17
    %p35 = scmp.ge.s32.totalorder %s34, 2
    %s36 = scalar_select %p35, 0, %s34
    %s37 = ssub.s32 %s17, %s36
    %s38 = ssub.s32 %s18, %s32
    %s39 = sor.u32 %s37, %s38
    %s40 = ssub.s32 %s19, %s28
    %s41 = sor.u32 %s39, %s40
    %p42 = scmp.eq.s32.totalorder %s41, 0
    %s44 = sadd.s32 %s43, 1
    %s45 = scalar_select %p42, %s43, %s44
    %p48 = pneg %p42
    %p49 = scmp.eq.s32.totalorder %s10, 1
    %p50 = por %p48, %p49
    %p51 = scmp.ne.s32.totalorder %s43, %s46
    %p52 = scmp.eq.s32.totalorder %s10, 0
    %p53 = por %p51, %p52
    %p54 = scmp.ne.s32.totalorder %s43, %s46
    %p55 = scmp.eq.s32.totalorder %s15, 1
    %p56 = por %p54, %p55
    %p57 = scmp.ne.s32.totalorder %s46, %s47
    %p58 = scmp.eq.s32.totalorder %s15, 0
    %p59 = por %p57, %p58
    %p60 = scmp.ne.s32.totalorder %s46, %s47
    %p61 = scmp.eq.s32.totalorder %s16, 1
    %p62 = por %p60, %p61
    %p64 = scmp.ne.s32.totalorder %s47, %s63
    %p65 = scmp.eq.s32.totalorder %s16, 0
    %p66 = por %p64, %p65
    %s67 = ssub.s32 %s17, %s36
    %p68 = scmp.eq.s32.totalorder %s67, 0
    %s70 = sadd.s32 %s69, 1
    %s71 = scalar_select %p68, %s69, %s70
    %p74 = pneg %p68
    %p75 = scmp.eq.s32.totalorder %s10, 1
    %p76 = por %p74, %p75
    %p77 = scmp.ne.s32.totalorder %s69, %s72
    %p78 = scmp.eq.s32.totalorder %s10, 0
    %p79 = por %p77, %p78
    %p80 = scmp.ne.s32.totalorder %s69, %s72
    %p81 = scmp.eq.s32.totalorder %s15, 1
    %p82 = por %p80, %p81
    %p83 = scmp.ne.s32.totalorder %s72, %s73
    %p84 = scmp.eq.s32.totalorder %s15, 0
    %p85 = por %p83, %p84
    %p86 = scmp.ne.s32.totalorder %s72, %s73
    %p87 = scmp.eq.s32.totalorder %s16, 1
    %p88 = por %p86, %p87
    %p90 = scmp.ne.s32.totalorder %s73, %s89
    %p91 = scmp.eq.s32.totalorder %s16, 0
    %p92 = por %p90, %p91
    %s93 = ssub.s32 %s17, %s36
    %s94 = ssub.s32 %s18, %s32
    %s95 = sor.u32 %s93, %s94
    %p96 = scmp.eq.s32.totalorder %s95, 0
    %s98 = sadd.s32 %s97, 1
    %s99 = scalar_select %p96, %s97, %s98
    %p102 = pneg %p96
    %p103 = scmp.eq.s32.totalorder %s10, 1
    %p104 = por %p102, %p103
    %p105 = scmp.ne.s32.totalorder %s97, %s100
    %p106 = scmp.eq.s32.totalorder %s10, 0
    %p107 = por %p105, %p106
    %p108 = scmp.ne.s32.totalorder %s97, %s100
    %p109 = scmp.eq.s32.totalorder %s15, 1
    %p110 = por %p108, %p109
    %p111 = scmp.ne.s32.totalorder %s100, %s101
    %p112 = scmp.eq.s32.totalorder %s15, 0
    %p113 = por %p111, %p112
    %p114 = scmp.ne.s32.totalorder %s100, %s101
    %p115 = scmp.eq.s32.totalorder %s16, 1
    %p116 = por %p114, %p115
    %p118 = scmp.ne.s32.totalorder %s101, %s117
    %p119 = scmp.eq.s32.totalorder %s16, 0
    %p120 = por %p118, %p119
    %s121 = ssub.s32 %s17, %s36
    %s122 = ssub.s32 %s19, %s28
    %s123 = sor.u32 %s121, %s122
    %p124 = scmp.eq.s32.totalorder %s123, 0
    %s126 = sadd.s32 %s125, 1
    %s127 = scalar_select %p124, %s125, %s126
    %p130 = pneg %p124
    %p131 = scmp.eq.s32.totalorder %s10, 1
    %p132 = por %p130, %p131
    %p133 = scmp.ne.s32.totalorder %s125, %s128
    %p134 = scmp.eq.s32.totalorder %s10, 0
    %p135 = por %p133, %p134
    %p136 = scmp.ne.s32.totalorder %s125, %s128
    %p137 = scmp.eq.s32.totalorder %s15, 1
    %p138 = por %p136, %p137
    %p139 = scmp.ne.s32.totalorder %s128, %s129
    %p140 = scmp.eq.s32.totalorder %s15, 0
    %p141 = por %p139, %p140
    %p142 = scmp.ne.s32.totalorder %s128, %s129
    %p143 = scmp.eq.s32.totalorder %s16, 1
    %p144 = por %p142, %p143
    %p146 = scmp.ne.s32.totalorder %s129, %s145
    %p147 = scmp.eq.s32.totalorder %s16, 0
    %p148 = por %p146, %p147
    %s149 = ssub.s32 %s17, %s36
    %s150 = ssub.s32 %s18, %s32
    %s151 = sor.u32 %s149, %s150
    %p152 = scmp.eq.s32.totalorder %s151, 0
    %s154 = sadd.s32 %s153, 1
    %s155 = scalar_select %p152, %s153, %s154
    %p158 = pneg %p152
    %p159 = scmp.eq.s32.totalorder %s10, 1
    %p160 = por %p158, %p159
    %p161 = scmp.ne.s32.totalorder %s153, %s156
    %p162 = scmp.eq.s32.totalorder %s10, 0
    %p163 = por %p161, %p162
    %p164 = scmp.ne.s32.totalorder %s153, %s156
    %p165 = scmp.eq.s32.totalorder %s15, 1
    %p166 = por %p164, %p165
    %p167 = scmp.ne.s32.totalorder %s156, %s157
    %p168 = scmp.eq.s32.totalorder %s15, 0
    %p169 = por %p167, %p168
    %p170 = scmp.ne.s32.totalorder %s156, %s157
    %p171 = scmp.eq.s32.totalorder %s16, 1
    %p172 = por %p170, %p171
    %p174 = scmp.ne.s32.totalorder %s157, %s173
    %p175 = scmp.eq.s32.totalorder %s16, 0
    %p176 = por %p174, %p175
    %p177 = scmp.le.s32.totalorder 1, %s10
    %p178 = scmp.lt.s32.totalorder %s10, 3
    %p179 = pnand %p177, %p178
    %p180 = pneg %p179
    // Predicated region
    $region9: #{sp_graph_attention.3} parent=5 // pred_check
      _
    $region10: #{sp_graph_attention.3} parent=5 // pred_check_branch
      %182 = sbr.rel (%p179) target = $region12
    $region11: #{sp_graph_attention.3} parent=5 // pred_region
      %s183 = ssub.s32 %s10, 1
    $region12: #{sp_graph_attention.3} parent=5 // pred_fallthru
      _
    %p184 = scmp.lt.s32.totalorder %s10, 2
    // Predicated region
    $region13: #{sp_graph_attention.3} parent=5 // pred_check
      %p185 = pneg %p184
    $region14: #{sp_graph_attention.3} parent=5 // pred_check_branch
      %187 = sbr.rel (%p185) target = $region16
    $region15: #{sp_graph_attention.3} parent=5 // pred_region
      // Predicated region
      $region17: #{sp_graph_attention.3} parent=15 // pred_check
        %p188 = pneg %p53
      $region18: #{sp_graph_attention.3} parent=15 // pred_check_branch
        %190 = sbr.rel (%p188) target = $region20
      $region19: #{sp_graph_attention.3} parent=15 // pred_region
        %s191 = smul.u32 4, %s18
        %p192 = scmp.lt.s32.totalorder %s17, 1
        %s193 = scalar_select %p192, %s17, 1
        %p194 = scmp.lt.s32.totalorder %s191, 3
        %s195 = scalar_select %p194, %s191, 3
        %p196 = scmp.lt.s32.totalorder %s19, 0
        %s197 = scalar_select %p196, %s19, 0
        %s198 = sadd.s32 %s197, %s195
        %s199 = smul.addr %s193, 4
        %s200 = sadd.s32 %s198, %s199
        %s201 = smul.addr %s200, 8
        %s202 = scalar_lea.vmem %s0, %s201
        %s203 = smul.u32 4, %s18
      $region20: #{sp_graph_attention.3} parent=15 // pred_fallthru
        _
      // Predicated region
      $region21: #{sp_graph_attention.3} parent=15 // pred_check
        %p204 = pneg %p79
      $region22: #{sp_graph_attention.3} parent=15 // pred_check_branch
        %206 = sbr.rel (%p204) target = $region24
      $region23: #{sp_graph_attention.3} parent=15 // pred_region
        %p207 = scmp.lt.s32.totalorder %s17, 1
        %s208 = scalar_select %p207, %s17, 1
        %s209 = smul.addr %s208, 16
        %s210 = smul.addr %s209, 4
        %s211 = scalar_lea.vmem %s1, %s210
      $region24: #{sp_graph_attention.3} parent=15 // pred_fallthru
        _
      // Predicated region
      $region25: #{sp_graph_attention.3} parent=15 // pred_check
        %p212 = pneg %p107
      $region26: #{sp_graph_attention.3} parent=15 // pred_check_branch
        %214 = sbr.rel (%p212) target = $region28
      $region27: #{sp_graph_attention.3} parent=15 // pred_region
        %s215 = smul.u32 16, %s18
        %p216 = scmp.lt.s32.totalorder %s17, 1
        %s217 = scalar_select %p216, %s17, 1
        %p218 = scmp.lt.s32.totalorder %s215, 15
        %s219 = scalar_select %p218, %s215, 15
        %s220 = smul.addr %s217, 16
        %s221 = sadd.s32 %s219, %s220
        %s222 = smul.addr %s221, 8
        %s223 = scalar_lea.vmem %s2, %s222
        %s224 = smul.u32 16, %s18
      $region28: #{sp_graph_attention.3} parent=15 // pred_fallthru
        _
      // Predicated region
      $region29: #{sp_graph_attention.3} parent=15 // pred_check
        %p225 = pneg %p135
      $region30: #{sp_graph_attention.3} parent=15 // pred_check_branch
        %227 = sbr.rel (%p225) target = $region32
      $region31: #{sp_graph_attention.3} parent=15 // pred_region
        %p228 = scmp.lt.s32.totalorder %s17, 1
        %s229 = scalar_select %p228, %s17, 1
        %p230 = scmp.lt.s32.totalorder %s19, 0
        %s231 = scalar_select %p230, %s19, 0
        %s232 = sadd.s32 %s231, %s229
        %s233 = smul.addr %s232, 2
        %s234 = scalar_lea.vmem %s3, %s233
      $region32: #{sp_graph_attention.3} parent=15 // pred_fallthru
        _
    $region16: #{sp_graph_attention.3} parent=5 // pred_fallthru
      _
    %p235 = scmp.le.s32.totalorder 1, %s10
    %p236 = scmp.lt.s32.totalorder %s10, 3
    %p237 = pnand %p235, %p236
    %p238 = pneg %p237
    // Predicated region
    $region33: #{sp_graph_attention.3} parent=5 // pred_check
      _
    $region34: #{sp_graph_attention.3} parent=5 // pred_check_branch
      %240 = sbr.rel (%p237) target = $region36
    $region35: #{sp_graph_attention.3} parent=5 // pred_region
      %s241 = ssub.s32 %s10, 1
      %s242 = smul.u32 4, %s21
      %p243 = scmp.lt.s32.totalorder %s20, 1
      %s244 = scalar_select %p243, %s20, 1
      %p245 = scmp.lt.s32.totalorder %s242, 3
      %s246 = scalar_select %p245, %s242, 3
      %p247 = scmp.lt.s32.totalorder %s22, 0
      %s248 = scalar_select %p247, %s22, 0
      %s249 = sadd.s32 %s248, %s246
      %s250 = smul.addr %s244, 4
      %s251 = sadd.s32 %s249, %s250
      %s252 = smul.addr %s251, 8
      %s253 = scalar_lea.vmem %s0, %s252
      %p254 = pneg %p59
      %p255 = pneg %p56
      %p256 = scmp.lt.s32.totalorder %s20, 1
      %s257 = scalar_select %p256, %s20, 1
      %s258 = smul.addr %s257, 16
      %s259 = smul.addr %s258, 4
      %s260 = scalar_lea.vmem %s1, %s259
      %p261 = pneg %p85
      %p262 = pneg %p82
      %s263 = smul.u32 16, %s21
      %p264 = scmp.lt.s32.totalorder %s20, 1
      %s265 = scalar_select %p264, %s20, 1
      %p266 = scmp.lt.s32.totalorder %s263, 15
      %s267 = scalar_select %p266, %s263, 15
      %s268 = smul.addr %s265, 16
      %s269 = sadd.s32 %s267, %s268
      %s270 = smul.addr %s269, 8
      %s271 = scalar_lea.vmem %s2, %s270
      %p272 = pneg %p113
      %p273 = pneg %p110
      %p274 = scmp.lt.s32.totalorder %s20, 1
      %s275 = scalar_select %p274, %s20, 1
      %p276 = scmp.lt.s32.totalorder %s22, 0
      %s277 = scalar_select %p276, %s22, 0
      %s278 = sadd.s32 %s277, %s275
      %s279 = smul.addr %s278, 2
      %s280 = scalar_lea.vmem %s3, %s279
      %p281 = pneg %p141
      %p282 = pneg %p138
      %p283 = pneg %p169
      %p284 = pneg %p166
      %s285 = smul.u32 16, %s21
      %p286 = scmp.lt.s32.totalorder %s20, 1
      %s287 = scalar_select %p286, %s20, 1
      %p288 = scmp.lt.s32.totalorder %s285, 15
      %s289 = scalar_select %p288, %s285, 15
      %s290 = smul.addr %s287, 16
      %s291 = sadd.s32 %s289, %s290
      %s292 = smul.addr %s291, 8
      %s293 = scalar_lea.vmem %s4, %s292
      %s294 = smul.u32 4, %s21
      %p295 = scmp.lt.s32.totalorder %s20, 1
      %s296 = scalar_select %p295, %s20, 1
      %p297 = scmp.lt.s32.totalorder %s294, 3
      %s298 = scalar_select %p297, %s294, 3
      %p299 = scmp.lt.s32.totalorder %s22, 0
      %s300 = scalar_select %p299, %s22, 0
      %s301 = sadd.s32 %s300, %s298
      %s302 = smul.addr %s296, 4
      %s303 = sadd.s32 %s301, %s302
      %s304 = smul.addr %s303, 8
      %s305 = scalar_lea.vmem %s0, %s304
      %s306 = smul.u32 4, %s21
      %p307 = scmp.lt.s32.totalorder %s20, 1
      %s308 = scalar_select %p307, %s20, 1
      %s309 = smul.addr %s308, 16
      %s310 = smul.addr %s309, 4
      %s311 = scalar_lea.vmem %s1, %s310
      %s312 = smul.u32 16, %s21
      %p313 = scmp.lt.s32.totalorder %s20, 1
      %s314 = scalar_select %p313, %s20, 1
      %p315 = scmp.lt.s32.totalorder %s312, 15
      %s316 = scalar_select %p315, %s312, 15
      %s317 = smul.addr %s314, 16
      %s318 = sadd.s32 %s316, %s317
      %s319 = smul.addr %s318, 8
      %s320 = scalar_lea.vmem %s2, %s319
      %s321 = smul.u32 16, %s21
      %p322 = scmp.lt.s32.totalorder %s20, 1
      %s323 = scalar_select %p322, %s20, 1
      %p324 = scmp.lt.s32.totalorder %s22, 0
      %s325 = scalar_select %p324, %s22, 0
      %s326 = sadd.s32 %s325, %s323
      %s327 = smul.addr %s326, 2
      %s328 = scalar_lea.vmem %s3, %s327
      %s329 = smul.u32 16, %s21
      %p330 = scmp.lt.s32.totalorder %s20, 1
      %s331 = scalar_select %p330, %s20, 1
      %p332 = scmp.lt.s32.totalorder %s329, 15
      %s333 = scalar_select %p332, %s329, 15
      %s334 = smul.addr %s331, 16
      %s335 = sadd.s32 %s333, %s334
      %s336 = smul.addr %s335, 8
      %s337 = scalar_lea.vmem %s4, %s336
      %s338 = smul.u32 16, %s21
      %p340 = scmp.eq.s32.totalorder %s22, 0
      // Predicated region
      $region37: #{sp_graph_attention.3} parent=35 // pred_check
        %p341 = pneg %p340
      $region38: #{sp_graph_attention.3} parent=35 // pred_check_branch
        %343 = sbr.rel (%p341) target = $region40
      $region39: #{sp_graph_attention.3} parent=35 // pred_region
        %344 = vst [vmem:[#allocation2] sm:$0xff] 0.0
        %345 = vst [vmem:[#allocation2 + $0x8] sm:$0xff] 0.0
        %346 = vst [vmem:[#allocation2 + $0x10] sm:$0xff] 0.0
        %347 = vst [vmem:[#allocation2 + $0x18] sm:$0xff] 0.0
        %348 = vst [vmem:[#allocation2 + $0x20] sm:$0xff] 0.0
        %349 = vst [vmem:[#allocation2 + $0x28] sm:$0xff] 0.0
        %350 = vst [vmem:[#allocation2 + $0x30] sm:$0xff] 0.0
        %351 = vst [vmem:[#allocation2 + $0x38] sm:$0xff] 0.0
        %352 = vst [vmem:[#allocation2 + $0x40] sm:$0xff] 0.0
        %353 = vst [vmem:[#allocation2 + $0x48] sm:$0xff] 0.0
        %354 = vst [vmem:[#allocation2 + $0x50] sm:$0xff] 0.0
        %355 = vst [vmem:[#allocation2 + $0x58] sm:$0xff] 0.0
        %356 = vst [vmem:[#allocation2 + $0x60] sm:$0xff] 0.0
        %357 = vst [vmem:[#allocation2 + $0x68] sm:$0xff] 0.0
        %358 = vst [vmem:[#allocation2 + $0x70] sm:$0xff] 0.0
        %359 = vst [vmem:[#allocation2 + $0x78] sm:$0xff] 0.0
      $region40: #{sp_graph_attention.3} parent=35 // pred_fallthru
        _
      %v360 = vld [vmem:[%s305] sm:$0xff]
      %v361 = vld [vmem:[%s305 + $0x8] sm:$0xff]
      %v362 = vld [vmem:[%s305 + $0x10] sm:$0xff]
      %v363 = vld [vmem:[%s305 + $0x18] sm:$0xff]
      %v364 = vunpack.c.l.s8.bf16 %v360
      %v365 = vunpack.c.h.s8.bf16 %v360
      %v366 = vunpack.c.l.s8.bf16 %v361
      %v367 = vunpack.c.h.s8.bf16 %v361
      %v368 = vunpack.c.l.s8.bf16 %v362
      %v369 = vunpack.c.h.s8.bf16 %v362
      %v370 = vunpack.c.l.s8.bf16 %v363
      %v371 = vunpack.c.h.s8.bf16 %v363
      %v372 = vld [vmem:[%s320] sm:$0xff]
      %v373 = vld [vmem:[%s320 + $0x8] sm:$0xff]
      %v374 = vld [vmem:[%s320 + $0x10] sm:$0xff]
      %v375 = vld [vmem:[%s320 + $0x18] sm:$0xff]
      %v376 = vld [vmem:[%s320 + $0x20] sm:$0xff]
      %v377 = vld [vmem:[%s320 + $0x28] sm:$0xff]
      %v378 = vld [vmem:[%s320 + $0x30] sm:$0xff]
      %v379 = vld [vmem:[%s320 + $0x38] sm:$0xff]
      %v380 = vld [vmem:[%s320 + $0x40] sm:$0xff]
      %v381 = vld [vmem:[%s320 + $0x48] sm:$0xff]
      %v382 = vld [vmem:[%s320 + $0x50] sm:$0xff]
      %v383 = vld [vmem:[%s320 + $0x58] sm:$0xff]
      %v384 = vld [vmem:[%s320 + $0x60] sm:$0xff]
      %v385 = vld [vmem:[%s320 + $0x68] sm:$0xff]
      %v386 = vld [vmem:[%s320 + $0x70] sm:$0xff]
      %v387 = vld [vmem:[%s320 + $0x78] sm:$0xff]
      %v388 = vld [vmem:[%s328] sm:$0x1]
      %390 = vset.pattern.permute.xlu0 0
      %391 = vperm.xlu0 %390, %v372
      %v392 = vpop.permute.xlu0 %391
      %395 = vset.pattern.permute.xlu0 0
      %396 = vperm.xlu0 %395, %v373
      %v397 = vpop.permute.xlu0 %396
      %400 = vset.pattern.permute.xlu0 0
      %401 = vperm.xlu0 %400, %v374
      %v402 = vpop.permute.xlu0 %401
      %405 = vset.pattern.permute.xlu0 0
      %406 = vperm.xlu0 %405, %v375
      %v407 = vpop.permute.xlu0 %406
      %410 = vset.pattern.permute.xlu0 0
      %411 = vperm.xlu0 %410, %v376
      %v412 = vpop.permute.xlu0 %411
      %415 = vset.pattern.permute.xlu0 0
      %416 = vperm.xlu0 %415, %v377
      %v417 = vpop.permute.xlu0 %416
      %420 = vset.pattern.permute.xlu0 0
      %421 = vperm.xlu0 %420, %v378
      %v422 = vpop.permute.xlu0 %421
      %425 = vset.pattern.permute.xlu0 0
      %426 = vperm.xlu0 %425, %v379
      %v427 = vpop.permute.xlu0 %426
      %430 = vset.pattern.permute.xlu0 0
      %431 = vperm.xlu0 %430, %v380
      %v432 = vpop.permute.xlu0 %431
      %435 = vset.pattern.permute.xlu0 0
      %436 = vperm.xlu0 %435, %v381
      %v437 = vpop.permute.xlu0 %436
      %440 = vset.pattern.permute.xlu0 0
      %441 = vperm.xlu0 %440, %v382
      %v442 = vpop.permute.xlu0 %441
      %445 = vset.pattern.permute.xlu0 0
      %446 = vperm.xlu0 %445, %v383
      %v447 = vpop.permute.xlu0 %446
      %450 = vset.pattern.permute.xlu0 0
      %451 = vperm.xlu0 %450, %v384
      %v452 = vpop.permute.xlu0 %451
      %455 = vset.pattern.permute.xlu0 0
      %456 = vperm.xlu0 %455, %v385
      %v457 = vpop.permute.xlu0 %456
      %460 = vset.pattern.permute.xlu0 0
      %461 = vperm.xlu0 %460, %v386
      %v462 = vpop.permute.xlu0 %461
      %465 = vset.pattern.permute.xlu0 0
      %466 = vperm.xlu0 %465, %v387
      %v467 = vpop.permute.xlu0 %466
      %v469 = vlaneseq
      %v470 = vshrl.u32 %v469, 7
      %v471 = vsub.s32 0, %v470
      %v472 = vrot.slane %v388, %v471
      %v473 = vadd.f32 %v392, %v472
      %v474 = vadd.f32 %v397, %v472
      %v475 = vadd.f32 %v402, %v472
      %v476 = vadd.f32 %v407, %v472
      %v477 = vadd.f32 %v412, %v472
      %v478 = vadd.f32 %v417, %v472
      %v479 = vadd.f32 %v422, %v472
      %v480 = vadd.f32 %v427, %v472
      %v481 = vadd.f32 %v432, %v472
      %v482 = vadd.f32 %v437, %v472
      %v483 = vadd.f32 %v442, %v472
      %v484 = vadd.f32 %v447, %v472
      %v485 = vadd.f32 %v452, %v472
      %v486 = vadd.f32 %v457, %v472
      %v487 = vadd.f32 %v462, %v472
      %v488 = vadd.f32 %v467, %v472
      %v489 = vld [vmem:[%s328 + $0x1] sm:$0x1]
      %490 = vset.pattern.permute.xlu0 1
      %491 = vperm.xlu0 %490, %v372
      %v492 = vpop.permute.xlu0 %491
      %494 = vset.pattern.permute.xlu0 1
      %495 = vperm.xlu0 %494, %v373
      %v496 = vpop.permute.xlu0 %495
      %498 = vset.pattern.permute.xlu0 1
      %499 = vperm.xlu0 %498, %v374
      %v500 = vpop.permute.xlu0 %499
      %502 = vset.pattern.permute.xlu0 1
      %503 = vperm.xlu0 %502, %v375
      %v504 = vpop.permute.xlu0 %503
      %506 = vset.pattern.permute.xlu0 1
      %507 = vperm.xlu0 %506, %v376
      %v508 = vpop.permute.xlu0 %507
      %510 = vset.pattern.permute.xlu0 1
      %511 = vperm.xlu0 %510, %v377
      %v512 = vpop.permute.xlu0 %511
      %514 = vset.pattern.permute.xlu0 1
      %515 = vperm.xlu0 %514, %v378
      %v516 = vpop.permute.xlu0 %515
      %518 = vset.pattern.permute.xlu0 1
      %519 = vperm.xlu0 %518, %v379
      %v520 = vpop.permute.xlu0 %519
      %522 = vset.pattern.permute.xlu0 1
      %523 = vperm.xlu0 %522, %v380
      %v524 = vpop.permute.xlu0 %523
      %526 = vset.pattern.permute.xlu0 1
      %527 = vperm.xlu0 %526, %v381
      %v528 = vpop.permute.xlu0 %527
      %530 = vset.pattern.permute.xlu0 1
      %531 = vperm.xlu0 %530, %v382
      %v532 = vpop.permute.xlu0 %531
      %534 = vset.pattern.permute.xlu0 1
      %535 = vperm.xlu0 %534, %v383
      %v536 = vpop.permute.xlu0 %535
      %538 = vset.pattern.permute.xlu0 1
      %539 = vperm.xlu0 %538, %v384
      %v540 = vpop.permute.xlu0 %539
      %542 = vset.pattern.permute.xlu0 1
      %543 = vperm.xlu0 %542, %v385
      %v544 = vpop.permute.xlu0 %543
      %546 = vset.pattern.permute.xlu0 1
      %547 = vperm.xlu0 %546, %v386
      %v548 = vpop.permute.xlu0 %547
      %550 = vset.pattern.permute.xlu0 1
      %551 = vperm.xlu0 %550, %v387
      %v552 = vpop.permute.xlu0 %551
      %v554 = vlaneseq
      %v555 = vshrl.u32 %v554, 7
      %v556 = vsub.s32 0, %v555
      %v557 = vrot.slane %v489, %v556
      %v558 = vadd.f32 %v492, %v557
      %v559 = vadd.f32 %v496, %v557
      %v560 = vadd.f32 %v500, %v557
      %v561 = vadd.f32 %v504, %v557
      %v562 = vadd.f32 %v508, %v557
      %v563 = vadd.f32 %v512, %v557
      %v564 = vadd.f32 %v516, %v557
      %v565 = vadd.f32 %v520, %v557
      %v566 = vadd.f32 %v524, %v557
      %v567 = vadd.f32 %v528, %v557
      %v568 = vadd.f32 %v532, %v557
      %v569 = vadd.f32 %v536, %v557
      %v570 = vadd.f32 %v540, %v557
      %v571 = vadd.f32 %v544, %v557
      %v572 = vadd.f32 %v548, %v557
      %v573 = vadd.f32 %v552, %v557
      %v574 = vmin.f32 %v473, %v558
      %v575 = vmin.f32 %v474, %v559
      %v576 = vmin.f32 %v475, %v560
      %v577 = vmin.f32 %v476, %v561
      %v578 = vmin.f32 %v477, %v562
      %v579 = vmin.f32 %v478, %v563
      %v580 = vmin.f32 %v479, %v564
      %v581 = vmin.f32 %v480, %v565
      %v582 = vmin.f32 %v481, %v566
      %v583 = vmin.f32 %v482, %v567
      %v584 = vmin.f32 %v483, %v568
      %v585 = vmin.f32 %v484, %v569
      %v586 = vmin.f32 %v485, %v570
      %v587 = vmin.f32 %v486, %v571
      %v588 = vmin.f32 %v487, %v572
      %v589 = vmin.f32 %v488, %v573
      %v590 = vmin.f32 %v574, 80.0
      %v591 = vmin.f32 %v575, 80.0
      %v592 = vmin.f32 %v576, 80.0
      %v593 = vmin.f32 %v577, 80.0
      %v594 = vmin.f32 %v578, 80.0
      %v595 = vmin.f32 %v579, 80.0
      %v596 = vmin.f32 %v580, 80.0
      %v597 = vmin.f32 %v581, 80.0
      %v598 = vmin.f32 %v582, 80.0
      %v599 = vmin.f32 %v583, 80.0
      %v600 = vmin.f32 %v584, 80.0
      %v601 = vmin.f32 %v585, 80.0
      %v602 = vmin.f32 %v586, 80.0
      %v603 = vmin.f32 %v587, 80.0
      %v604 = vmin.f32 %v588, 80.0
      %v605 = vmin.f32 %v589, 80.0
      %v606 = vmul.f32 %v590, 1.442695
      %v607 = vpow.pop %v606
      %v608 = vmul.f32 %v591, 1.442695
      %v609 = vpow.pop %v608
      %v610 = vmul.f32 %v592, 1.442695
      %v611 = vpow.pop %v610
      %v612 = vmul.f32 %v593, 1.442695
      %v613 = vpow.pop %v612
      %v614 = vmul.f32 %v594, 1.442695
      %v615 = vpow.pop %v614
      %v616 = vmul.f32 %v595, 1.442695
      %v617 = vpow.pop %v616
      %v618 = vmul.f32 %v596, 1.442695
      %v619 = vpow.pop %v618
      %v620 = vmul.f32 %v597, 1.442695
      %v621 = vpow.pop %v620
      %v622 = vmul.f32 %v598, 1.442695
      %v623 = vpow.pop %v622
      %v624 = vmul.f32 %v599, 1.442695
      %v625 = vpow.pop %v624
      %v626 = vmul.f32 %v600, 1.442695
      %v627 = vpow.pop %v626
      %v628 = vmul.f32 %v601, 1.442695
      %v629 = vpow.pop %v628
      %v630 = vmul.f32 %v602, 1.442695
      %v631 = vpow.pop %v630
      %v632 = vmul.f32 %v603, 1.442695
      %v633 = vpow.pop %v632
      %v634 = vmul.f32 %v604, 1.442695
      %v635 = vpow.pop %v634
      %v636 = vmul.f32 %v605, 1.442695
      %v637 = vpow.pop %v636
      %v638 = vpack.c.bf16 %v609, %v607
      %v639 = vpack.c.bf16 %v613, %v611
      %v640 = vpack.c.bf16 %v617, %v615
      %v641 = vpack.c.bf16 %v621, %v619
      %v642 = vpack.c.bf16 %v625, %v623
      %v643 = vpack.c.bf16 %v629, %v627
      %v644 = vpack.c.bf16 %v633, %v631
      %v645 = vpack.c.bf16 %v637, %v635
      %v646 = vmul.bf16 %v638, %v364
      %v647 = vmul.bf16 %v639, %v365
      %v648 = vmul.bf16 %v640, %v366
      %v649 = vmul.bf16 %v641, %v367
      %v650 = vmul.bf16 %v642, %v368
      %v651 = vmul.bf16 %v643, %v369
      %v652 = vmul.bf16 %v644, %v370
      %v653 = vmul.bf16 %v645, %v371
      %s654 = smul.u32 %s22, 128
      %s655 = sshra.s32 %s654, 3
      %s656 = sand.u32 %s654, 7
      %s657 = smul.addr %s655, 4
      %s658 = scalar_lea.vmem %s311, %s657
      %v659 = vld [vmem:[%s658] sm:$0xf]
      %v660 = vld [vmem:[%s658 + $0x4] sm:$0xf]
      %v661 = vld [vmem:[%s658 + $0x8] sm:$0xf]
      %v662 = vld [vmem:[%s658 + $0xc] sm:$0xf]
      %v663 = vld [vmem:[%s658 + $0x10] sm:$0xf]
      %v664 = vld [vmem:[%s658 + $0x14] sm:$0xf]
      %v665 = vld [vmem:[%s658 + $0x18] sm:$0xf]
      %v666 = vld [vmem:[%s658 + $0x1c] sm:$0xf]
      %v667 = vld [vmem:[%s658 + $0x20] sm:$0xf]
      %v668 = vld [vmem:[%s658 + $0x24] sm:$0xf]
      %v669 = vld [vmem:[%s658 + $0x28] sm:$0xf]
      %v670 = vld [vmem:[%s658 + $0x2c] sm:$0xf]
      %v671 = vld [vmem:[%s658 + $0x30] sm:$0xf]
      %v672 = vld [vmem:[%s658 + $0x34] sm:$0xf]
      %v673 = vld [vmem:[%s658 + $0x38] sm:$0xf]
      %v674 = vld [vmem:[%s658 + $0x3c] sm:$0xf]
      %v675 = vld [vmem:[#allocation2] sm:$0xff]
      %v676 = vld [vmem:[#allocation2 + $0x8] sm:$0xff]
      %v677 = vld [vmem:[#allocation2 + $0x10] sm:$0xff]
      %v678 = vld [vmem:[#allocation2 + $0x18] sm:$0xff]
      %v679 = vld [vmem:[#allocation2 + $0x20] sm:$0xff]
      %v680 = vld [vmem:[#allocation2 + $0x28] sm:$0xff]
      %v681 = vld [vmem:[#allocation2 + $0x30] sm:$0xff]
      %v682 = vld [vmem:[#allocation2 + $0x38] sm:$0xff]
      %v683 = vld [vmem:[#allocation2 + $0x40] sm:$0xff]
      %v684 = vld [vmem:[#allocation2 + $0x48] sm:$0xff]
      %v685 = vld [vmem:[#allocation2 + $0x50] sm:$0xff]
      %v686 = vld [vmem:[#allocation2 + $0x58] sm:$0xff]
      %v687 = vld [vmem:[#allocation2 + $0x60] sm:$0xff]
      %v688 = vld [vmem:[#allocation2 + $0x68] sm:$0xff]
      %v689 = vld [vmem:[#allocation2 + $0x70] sm:$0xff]
      %v690 = vld [vmem:[#allocation2 + $0x78] sm:$0xff]
      %v707 = vunpack.c.l.b16 %v659
      %v708 = vunpack.c.l.b16 %v660
      %v709 = vunpack.c.l.b16 %v661
      %v710 = vunpack.c.l.b16 %v662
      %v711 = vunpack.c.l.b16 %v663
      %v712 = vunpack.c.l.b16 %v664
      %v713 = vunpack.c.l.b16 %v665
      %v714 = vunpack.c.l.b16 %v666
      %v715 = vunpack.c.l.b16 %v667
      %v716 = vunpack.c.l.b16 %v668
      %v717 = vunpack.c.l.b16 %v669
      %v718 = vunpack.c.l.b16 %v670
      %v719 = vunpack.c.l.b16 %v671
      %v720 = vunpack.c.l.b16 %v672
      %v721 = vunpack.c.l.b16 %v673
      %v722 = vunpack.c.l.b16 %v674
      %v723 = vpack.c.b16 %v708, %v707
      %v724 = vpack.c.b16 %v710, %v709
      %v725 = vpack.c.b16 %v712, %v711
      %v726 = vpack.c.b16 %v714, %v713
      %v727 = vpack.c.b16 %v716, %v715
      %v728 = vpack.c.b16 %v718, %v717
      %v729 = vpack.c.b16 %v720, %v719
      %v730 = vpack.c.b16 %v722, %v721
      %739 = vmatprep.subr.bf16.mxu0 0
      %740 = vmatpush1.bf16.msra.mxu0 %v723
      %741 = vmatprep.subr.bf16.mxu0 0
      %742 = vmatpush1.bf16.msra.mxu0 %v724
      %743 = vmatprep.subr.bf16.mxu0 0
      %744 = vmatpush1.bf16.msra.mxu0 %v725
      %745 = vmatprep.subr.bf16.mxu0 0
      %746 = vmatpush1.bf16.msra.mxu0 %v726
      %747 = vmatprep.subr.bf16.mxu0 0
      %748 = vmatpush1.bf16.msra.mxu0 %v727
      %749 = vmatprep.subr.bf16.mxu0 0
      %750 = vmatpush1.bf16.msra.mxu0 %v728
      %751 = vmatprep.subr.bf16.mxu0 0
      %752 = vmatpush1.bf16.msra.mxu0 %v729
      %753 = vmatprep.subr.bf16.mxu0 0
      %754 = vmatpush1.bf16.msra.mxu0 %v730
      %755 = vmatprep.subr.bf16.mxu0 0
      %756 = vmatpush1.bf16.msra.mxu0 0
      %757 = vmatprep.subr.bf16.mxu0 0
      %758 = vmatpush1.bf16.msra.mxu0 0
      %759 = vmatprep.subr.bf16.mxu0 0
      %760 = vmatpush1.bf16.msra.mxu0 0
      %761 = vmatprep.subr.bf16.mxu0 0
      %762 = vmatpush1.bf16.msra.mxu0 0
      %763 = vmatprep.subr.bf16.mxu0 0
      %764 = vmatpush1.bf16.msra.mxu0 0
      %765 = vmatprep.subr.bf16.mxu0 0
      %766 = vmatpush1.bf16.msra.mxu0 0
      %767 = vmatprep.subr.bf16.mxu0 0
      %768 = vmatpush1.bf16.msra.mxu0 0
      %769 = vmatprep.subr.bf16.mxu0 0
      %770 = vmatpush1.bf16.msra.mxu0 0
      %771 = vmatprep.mubr.bf16.mxu0 0
      %772 = vmatmul.mubr.bf16.gmra.mrb[0].mxu0 %v646
      %v773 = vpop.f32.mrb[0].mxu0
      %v774 = vadd.f32 0.0, %v773
      %v775 = vpop.f32.mrb[0].mxu0
      %v776 = vpop.f32.mrb[0].mxu0
      %v777 = vadd.f32 0.0, %v776
      %v778 = vpop.f32.mrb[0].mxu0
      %779 = vmatprep.mubr.bf16.mxu0 0
      %780 = vmatmul.mubr.bf16.gmra.mrb[0].mxu0 %v647
      %v781 = vpop.f32.mrb[0].mxu0
      %v782 = vadd.f32 0.0, %v781
      %v783 = vpop.f32.mrb[0].mxu0
      %v784 = vpop.f32.mrb[0].mxu0
      %v785 = vadd.f32 0.0, %v784
      %v786 = vpop.f32.mrb[0].mxu0
      %787 = vmatprep.mubr.bf16.mxu0 0
      %788 = vmatmul.mubr.bf16.gmra.mrb[0].mxu0 %v648
      %v789 = vpop.f32.mrb[0].mxu0
      %v790 = vadd.f32 0.0, %v789
      %v791 = vpop.f32.mrb[0].mxu0
      %v792 = vpop.f32.mrb[0].mxu0
      %v793 = vadd.f32 0.0, %v792
      %v794 = vpop.f32.mrb[0].mxu0
      %795 = vmatprep.mubr.bf16.mxu0 0
      %796 = vmatmul.mubr.bf16.gmra.mrb[0].mxu0 %v649
      %v797 = vpop.f32.mrb[0].mxu0
      %v798 = vadd.f32 0.0, %v797
      %v799 = vpop.f32.mrb[0].mxu0
      %v800 = vpop.f32.mrb[0].mxu0
      %v801 = vadd.f32 0.0, %v800
      %v802 = vpop.f32.mrb[0].mxu0
      %803 = vmatprep.mubr.bf16.mxu0 0
      %804 = vmatmul.mubr.bf16.gmra.mrb[0].mxu0 %v650
      %v805 = vpop.f32.mrb[0].mxu0
      %v806 = vadd.f32 0.0, %v805
      %v807 = vpop.f32.mrb[0].mxu0
      %v808 = vpop.f32.mrb[0].mxu0
      %v809 = vadd.f32 0.0, %v808
      %v810 = vpop.f32.mrb[0].mxu0
      %811 = vmatprep.mubr.bf16.mxu0 0
      %812 = vmatmul.mubr.bf16.gmra.mrb[0].mxu0 %v651
      %v813 = vpop.f32.mrb[0].mxu0
      %v814 = vadd.f32 0.0, %v813
      %v815 = vpop.f32.mrb[0].mxu0
      %v816 = vpop.f32.mrb[0].mxu0
      %v817 = vadd.f32 0.0, %v816
      %v818 = vpop.f32.mrb[0].mxu0
      %819 = vmatprep.mubr.bf16.mxu0 0
      %820 = vmatmul.mubr.bf16.gmra.mrb[0].mxu0 %v652
      %v821 = vpop.f32.mrb[0].mxu0
      %v822 = vadd.f32 0.0, %v821
      %v823 = vpop.f32.mrb[0].mxu0
      %v824 = vpop.f32.mrb[0].mxu0
      %v825 = vadd.f32 0.0, %v824
      %v826 = vpop.f32.mrb[0].mxu0
      %827 = vmatprep.mubr.bf16.mxu0 0
      %828 = vmatmul.mubr.bf16.gmra.mrb[0].mxu0 %v653
      %v829 = vpop.f32.mrb[0].mxu0
      %v830 = vadd.f32 0.0, %v829
      %v831 = vpop.f32.mrb[0].mxu0
      %v832 = vpop.f32.mrb[0].mxu0
      %v833 = vadd.f32 0.0, %v832
      %v834 = vpop.f32.mrb[0].mxu0
      %835 = vdwg.mxu0
      %v836 = vadd.f32 %v675, %v774
      %v837 = vadd.f32 %v676, %v777
      %v838 = vadd.f32 %v677, %v782
      %v839 = vadd.f32 %v678, %v785
      %v840 = vadd.f32 %v679, %v790
      %v841 = vadd.f32 %v680, %v793
      %v842 = vadd.f32 %v681, %v798
      %v843 = vadd.f32 %v682, %v801
      %v844 = vadd.f32 %v683, %v806
      %v845 = vadd.f32 %v684, %v809
      %v846 = vadd.f32 %v685, %v814
      %v847 = vadd.f32 %v686, %v817
      %v848 = vadd.f32 %v687, %v822
      %v849 = vadd.f32 %v688, %v825
      %v850 = vadd.f32 %v689, %v830
      %v851 = vadd.f32 %v690, %v833
      %852 = vst [vmem:[#allocation2] sm:$0xff] %v836
      %853 = vst [vmem:[#allocation2 + $0x8] sm:$0xff] %v837
      %854 = vst [vmem:[#allocation2 + $0x10] sm:$0xff] %v838
      %855 = vst [vmem:[#allocation2 + $0x18] sm:$0xff] %v839
      %856 = vst [vmem:[#allocation2 + $0x20] sm:$0xff] %v840
      %857 = vst [vmem:[#allocation2 + $0x28] sm:$0xff] %v841
      %858 = vst [vmem:[#allocation2 + $0x30] sm:$0xff] %v842
      %859 = vst [vmem:[#allocation2 + $0x38] sm:$0xff] %v843
      %860 = vst [vmem:[#allocation2 + $0x40] sm:$0xff] %v844
      %861 = vst [vmem:[#allocation2 + $0x48] sm:$0xff] %v845
      %862 = vst [vmem:[#allocation2 + $0x50] sm:$0xff] %v846
      %863 = vst [vmem:[#allocation2 + $0x58] sm:$0xff] %v847
      %864 = vst [vmem:[#allocation2 + $0x60] sm:$0xff] %v848
      %865 = vst [vmem:[#allocation2 + $0x68] sm:$0xff] %v849
      %866 = vst [vmem:[#allocation2 + $0x70] sm:$0xff] %v850
      %867 = vst [vmem:[#allocation2 + $0x78] sm:$0xff] %v851
      // Predicated region
      $region41: #{sp_graph_attention.3} parent=35 // pred_check
        %p868 = pneg %p340
      $region42: #{sp_graph_attention.3} parent=35 // pred_check_branch
        %870 = sbr.rel (%p868) target = $region44
      $region43: #{sp_graph_attention.3} parent=35 // pred_region
        %v871 = vld [vmem:[#allocation2] sm:$0xff]
        %v872 = vld [vmem:[#allocation2 + $0x8] sm:$0xff]
        %v873 = vld [vmem:[#allocation2 + $0x10] sm:$0xff]
        %v874 = vld [vmem:[#allocation2 + $0x18] sm:$0xff]
        %v875 = vld [vmem:[#allocation2 + $0x20] sm:$0xff]
        %v876 = vld [vmem:[#allocation2 + $0x28] sm:$0xff]
        %v877 = vld [vmem:[#allocation2 + $0x30] sm:$0xff]
        %v878 = vld [vmem:[#allocation2 + $0x38] sm:$0xff]
        %v879 = vld [vmem:[#allocation2 + $0x40] sm:$0xff]
        %v880 = vld [vmem:[#allocation2 + $0x48] sm:$0xff]
        %v881 = vld [vmem:[#allocation2 + $0x50] sm:$0xff]
        %v882 = vld [vmem:[#allocation2 + $0x58] sm:$0xff]
        %v883 = vld [vmem:[#allocation2 + $0x60] sm:$0xff]
        %v884 = vld [vmem:[#allocation2 + $0x68] sm:$0xff]
        %v885 = vld [vmem:[#allocation2 + $0x70] sm:$0xff]
        %v886 = vld [vmem:[#allocation2 + $0x78] sm:$0xff]
        %vm887 = vcmp.eq.f32.partialorder %v871, 0.0
        %vm888 = vcmp.eq.f32.partialorder %v872, 0.0
        %vm889 = vcmp.eq.f32.partialorder %v873, 0.0
        %vm890 = vcmp.eq.f32.partialorder %v874, 0.0
        %vm891 = vcmp.eq.f32.partialorder %v875, 0.0
        %vm892 = vcmp.eq.f32.partialorder %v876, 0.0
        %vm893 = vcmp.eq.f32.partialorder %v877, 0.0
        %vm894 = vcmp.eq.f32.partialorder %v878, 0.0
        %vm895 = vcmp.eq.f32.partialorder %v879, 0.0
        %vm896 = vcmp.eq.f32.partialorder %v880, 0.0
        %vm897 = vcmp.eq.f32.partialorder %v881, 0.0
        %vm898 = vcmp.eq.f32.partialorder %v882, 0.0
        %vm899 = vcmp.eq.f32.partialorder %v883, 0.0
        %vm900 = vcmp.eq.f32.partialorder %v884, 0.0
        %vm901 = vcmp.eq.f32.partialorder %v885, 0.0
        %vm902 = vcmp.eq.f32.partialorder %v886, 0.0
        %v903 = vsel %vm887, 1.0, %v871
        %v904 = vsel %vm888, 1.0, %v872
        %v905 = vsel %vm889, 1.0, %v873
        %v906 = vsel %vm890, 1.0, %v874
        %v907 = vsel %vm891, 1.0, %v875
        %v908 = vsel %vm892, 1.0, %v876
        %v909 = vsel %vm893, 1.0, %v877
        %v910 = vsel %vm894, 1.0, %v878
        %v911 = vsel %vm895, 1.0, %v879
        %v912 = vsel %vm896, 1.0, %v880
        %v913 = vsel %vm897, 1.0, %v881
        %v914 = vsel %vm898, 1.0, %v882
        %v915 = vsel %vm899, 1.0, %v883
        %v916 = vsel %vm900, 1.0, %v884
        %v917 = vsel %vm901, 1.0, %v885
        %v918 = vsel %vm902, 1.0, %v886
        %920 = vset.pattern.permute.xlu0 8
        %921 = vperm.xlu0 %920, %v903
        %v922 = vpop.permute.xlu0 %921
        %925 = vset.pattern.permute.xlu0 8
        %926 = vperm.xlu0 %925, %v904
        %v927 = vpop.permute.xlu0 %926
        %930 = vset.pattern.permute.xlu0 8
        %931 = vperm.xlu0 %930, %v905
        %v932 = vpop.permute.xlu0 %931
        %935 = vset.pattern.permute.xlu0 8
        %936 = vperm.xlu0 %935, %v906
        %v937 = vpop.permute.xlu0 %936
        %940 = vset.pattern.permute.xlu0 8
        %941 = vperm.xlu0 %940, %v907
        %v942 = vpop.permute.xlu0 %941
        %945 = vset.pattern.permute.xlu0 8
        %946 = vperm.xlu0 %945, %v908
        %v947 = vpop.permute.xlu0 %946
        %950 = vset.pattern.permute.xlu0 8
        %951 = vperm.xlu0 %950, %v909
        %v952 = vpop.permute.xlu0 %951
        %955 = vset.pattern.permute.xlu0 8
        %956 = vperm.xlu0 %955, %v910
        %v957 = vpop.permute.xlu0 %956
        %960 = vset.pattern.permute.xlu0 8
        %961 = vperm.xlu0 %960, %v911
        %v962 = vpop.permute.xlu0 %961
        %965 = vset.pattern.permute.xlu0 8
        %966 = vperm.xlu0 %965, %v912
        %v967 = vpop.permute.xlu0 %966
        %970 = vset.pattern.permute.xlu0 8
        %971 = vperm.xlu0 %970, %v913
        %v972 = vpop.permute.xlu0 %971
        %975 = vset.pattern.permute.xlu0 8
        %976 = vperm.xlu0 %975, %v914
        %v977 = vpop.permute.xlu0 %976
        %980 = vset.pattern.permute.xlu0 8
        %981 = vperm.xlu0 %980, %v915
        %v982 = vpop.permute.xlu0 %981
        %985 = vset.pattern.permute.xlu0 8
        %986 = vperm.xlu0 %985, %v916
        %v987 = vpop.permute.xlu0 %986
        %990 = vset.pattern.permute.xlu0 8
        %991 = vperm.xlu0 %990, %v917
        %v992 = vpop.permute.xlu0 %991
        %995 = vset.pattern.permute.xlu0 8
        %996 = vperm.xlu0 %995, %v918
        %v997 = vpop.permute.xlu0 %996
        %v999 = vrcp.pop %v922
        %v1000 = vmul.f32 %v871, %v999
        %v1001 = vrcp.pop %v927
        %v1002 = vmul.f32 %v872, %v1001
        %v1003 = vrcp.pop %v932
        %v1004 = vmul.f32 %v873, %v1003
        %v1005 = vrcp.pop %v937
        %v1006 = vmul.f32 %v874, %v1005
        %v1007 = vrcp.pop %v942
        %v1008 = vmul.f32 %v875, %v1007
        %v1009 = vrcp.pop %v947
        %v1010 = vmul.f32 %v876, %v1009
        %v1011 = vrcp.pop %v952
        %v1012 = vmul.f32 %v877, %v1011
        %v1013 = vrcp.pop %v957
        %v1014 = vmul.f32 %v878, %v1013
        %v1015 = vrcp.pop %v962
        %v1016 = vmul.f32 %v879, %v1015
        %v1017 = vrcp.pop %v967
        %v1018 = vmul.f32 %v880, %v1017
        %v1019 = vrcp.pop %v972
        %v1020 = vmul.f32 %v881, %v1019
        %v1021 = vrcp.pop %v977
        %v1022 = vmul.f32 %v882, %v1021
        %v1023 = vrcp.pop %v982
        %v1024 = vmul.f32 %v883, %v1023
        %v1025 = vrcp.pop %v987
        %v1026 = vmul.f32 %v884, %v1025
        %v1027 = vrcp.pop %v992
        %v1028 = vmul.f32 %v885, %v1027
        %v1029 = vrcp.pop %v997
        %v1030 = vmul.f32 %v886, %v1029
        %v1031 = vsel %vm887, 1, 0
        %v1032 = vsel %vm888, 1, 0
        %v1033 = vsel %vm889, 1, 0
        %v1034 = vsel %vm890, 1, 0
        %v1035 = vsel %vm891, 1, 0
        %v1036 = vsel %vm892, 1, 0
        %v1037 = vsel %vm893, 1, 0
        %v1038 = vsel %vm894, 1, 0
        %v1039 = vsel %vm895, 1, 0
        %v1040 = vsel %vm896, 1, 0
        %v1041 = vsel %vm897, 1, 0
        %v1042 = vsel %vm898, 1, 0
        %v1043 = vsel %vm899, 1, 0
        %v1044 = vsel %vm900, 1, 0
        %v1045 = vsel %vm901, 1, 0
        %v1046 = vsel %vm902, 1, 0
        %1047 = vset.pattern.permute.xlu0 8
        %1048 = vperm.xlu0 %1047, %v1031
        %v1049 = vpop.permute.xlu0 %1048
        %1050 = vset.pattern.permute.xlu0 8
        %1051 = vperm.xlu0 %1050, %v1032
        %v1052 = vpop.permute.xlu0 %1051
        %1053 = vset.pattern.permute.xlu0 8
        %1054 = vperm.xlu0 %1053, %v1033
        %v1055 = vpop.permute.xlu0 %1054
        %1056 = vset.pattern.permute.xlu0 8
        %1057 = vperm.xlu0 %1056, %v1034
        %v1058 = vpop.permute.xlu0 %1057
        %1059 = vset.pattern.permute.xlu0 8
        %1060 = vperm.xlu0 %1059, %v1035
        %v1061 = vpop.permute.xlu0 %1060
        %1062 = vset.pattern.permute.xlu0 8
        %1063 = vperm.xlu0 %1062, %v1036
        %v1064 = vpop.permute.xlu0 %1063
        %1065 = vset.pattern.permute.xlu0 8
        %1066 = vperm.xlu0 %1065, %v1037
        %v1067 = vpop.permute.xlu0 %1066
        %1068 = vset.pattern.permute.xlu0 8
        %1069 = vperm.xlu0 %1068, %v1038
        %v1070 = vpop.permute.xlu0 %1069
        %1071 = vset.pattern.permute.xlu0 8
        %1072 = vperm.xlu0 %1071, %v1039
        %v1073 = vpop.permute.xlu0 %1072
        %1074 = vset.pattern.permute.xlu0 8
        %1075 = vperm.xlu0 %1074, %v1040
        %v1076 = vpop.permute.xlu0 %1075
        %1077 = vset.pattern.permute.xlu0 8
        %1078 = vperm.xlu0 %1077, %v1041
        %v1079 = vpop.permute.xlu0 %1078
        %1080 = vset.pattern.permute.xlu0 8
        %1081 = vperm.xlu0 %1080, %v1042
        %v1082 = vpop.permute.xlu0 %1081
        %1083 = vset.pattern.permute.xlu0 8
        %1084 = vperm.xlu0 %1083, %v1043
        %v1085 = vpop.permute.xlu0 %1084
        %1086 = vset.pattern.permute.xlu0 8
        %1087 = vperm.xlu0 %1086, %v1044
        %v1088 = vpop.permute.xlu0 %1087
        %1089 = vset.pattern.permute.xlu0 8
        %1090 = vperm.xlu0 %1089, %v1045
        %v1091 = vpop.permute.xlu0 %1090
        %1092 = vset.pattern.permute.xlu0 8
        %1093 = vperm.xlu0 %1092, %v1046
        %v1094 = vpop.permute.xlu0 %1093
        %vm1095 = vcmp.eq.s32.totalorder %v1049, 1
        %vm1096 = vcmp.eq.s32.totalorder %v1052, 1
        %vm1097 = vcmp.eq.s32.totalorder %v1055, 1
        %vm1098 = vcmp.eq.s32.totalorder %v1058, 1
        %vm1099 = vcmp.eq.s32.totalorder %v1061, 1
        %vm1100 = vcmp.eq.s32.totalorder %v1064, 1
        %vm1101 = vcmp.eq.s32.totalorder %v1067, 1
        %vm1102 = vcmp.eq.s32.totalorder %v1070, 1
        %vm1103 = vcmp.eq.s32.totalorder %v1073, 1
        %vm1104 = vcmp.eq.s32.totalorder %v1076, 1
        %vm1105 = vcmp.eq.s32.totalorder %v1079, 1
        %vm1106 = vcmp.eq.s32.totalorder %v1082, 1
        %vm1107 = vcmp.eq.s32.totalorder %v1085, 1
        %vm1108 = vcmp.eq.s32.totalorder %v1088, 1
        %vm1109 = vcmp.eq.s32.totalorder %v1091, 1
        %vm1110 = vcmp.eq.s32.totalorder %v1094, 1
        %v1111 = vsel %vm1095, -9e+15, %v1000
        %v1112 = vsel %vm1096, -9e+15, %v1002
        %v1113 = vsel %vm1097, -9e+15, %v1004
        %v1114 = vsel %vm1098, -9e+15, %v1006
        %v1115 = vsel %vm1099, -9e+15, %v1008
        %v1116 = vsel %vm1100, -9e+15, %v1010
        %v1117 = vsel %vm1101, -9e+15, %v1012
        %v1118 = vsel %vm1102, -9e+15, %v1014
        %v1119 = vsel %vm1103, -9e+15, %v1016
        %v1120 = vsel %vm1104, -9e+15, %v1018
        %v1121 = vsel %vm1105, -9e+15, %v1020
        %v1122 = vsel %vm1106, -9e+15, %v1022
        %v1123 = vsel %vm1107, -9e+15, %v1024
        %v1124 = vsel %vm1108, -9e+15, %v1026
        %v1125 = vsel %vm1109, -9e+15, %v1028
        %v1126 = vsel %vm1110, -9e+15, %v1030
        %vm1127 = vcmp.gt.f32.partialorder %v1111, 0.0
        %vm1128 = vcmp.gt.f32.partialorder %v1112, 0.0
        %vm1129 = vcmp.gt.f32.partialorder %v1113, 0.0
        %vm1130 = vcmp.gt.f32.partialorder %v1114, 0.0
        %vm1131 = vcmp.gt.f32.partialorder %v1115, 0.0
        %vm1132 = vcmp.gt.f32.partialorder %v1116, 0.0
        %vm1133 = vcmp.gt.f32.partialorder %v1117, 0.0
        %vm1134 = vcmp.gt.f32.partialorder %v1118, 0.0
        %vm1135 = vcmp.gt.f32.partialorder %v1119, 0.0
        %vm1136 = vcmp.gt.f32.partialorder %v1120, 0.0
        %vm1137 = vcmp.gt.f32.partialorder %v1121, 0.0
        %vm1138 = vcmp.gt.f32.partialorder %v1122, 0.0
        %vm1139 = vcmp.gt.f32.partialorder %v1123, 0.0
        %vm1140 = vcmp.gt.f32.partialorder %v1124, 0.0
        %vm1141 = vcmp.gt.f32.partialorder %v1125, 0.0
        %vm1142 = vcmp.gt.f32.partialorder %v1126, 0.0
        %v1143 = vmul.f32 %v1111, 1.442695
        %v1144 = vpow.pop %v1143
        %v1145 = vmul.f32 %v1112, 1.442695
        %v1146 = vpow.pop %v1145
        %v1147 = vmul.f32 %v1113, 1.442695
        %v1148 = vpow.pop %v1147
        %v1149 = vmul.f32 %v1114, 1.442695
        %v1150 = vpow.pop %v1149
        %v1151 = vmul.f32 %v1115, 1.442695
        %v1152 = vpow.pop %v1151
        %v1153 = vmul.f32 %v1116, 1.442695
        %v1154 = vpow.pop %v1153
        %v1155 = vmul.f32 %v1117, 1.442695
        %v1156 = vpow.pop %v1155
        %v1157 = vmul.f32 %v1118, 1.442695
        %v1158 = vpow.pop %v1157
        %v1159 = vmul.f32 %v1119, 1.442695
        %v1160 = vpow.pop %v1159
        %v1161 = vmul.f32 %v1120, 1.442695
        %v1162 = vpow.pop %v1161
        %v1163 = vmul.f32 %v1121, 1.442695
        %v1164 = vpow.pop %v1163
        %v1165 = vmul.f32 %v1122, 1.442695
        %v1166 = vpow.pop %v1165
        %v1167 = vmul.f32 %v1123, 1.442695
        %v1168 = vpow.pop %v1167
        %v1169 = vmul.f32 %v1124, 1.442695
        %v1170 = vpow.pop %v1169
        %v1171 = vmul.f32 %v1125, 1.442695
        %v1172 = vpow.pop %v1171
        %v1173 = vmul.f32 %v1126, 1.442695
        %v1174 = vpow.pop %v1173
        %v1175 = vsub.f32 %v1144, 1.0
        %v1176 = vsub.f32 %v1146, 1.0
        %v1177 = vsub.f32 %v1148, 1.0
        %v1178 = vsub.f32 %v1150, 1.0
        %v1179 = vsub.f32 %v1152, 1.0
        %v1180 = vsub.f32 %v1154, 1.0
        %v1181 = vsub.f32 %v1156, 1.0
        %v1182 = vsub.f32 %v1158, 1.0
        %v1183 = vsub.f32 %v1160, 1.0
        %v1184 = vsub.f32 %v1162, 1.0
        %v1185 = vsub.f32 %v1164, 1.0
        %v1186 = vsub.f32 %v1166, 1.0
        %v1187 = vsub.f32 %v1168, 1.0
        %v1188 = vsub.f32 %v1170, 1.0
        %v1189 = vsub.f32 %v1172, 1.0
        %v1190 = vsub.f32 %v1174, 1.0
        %v1191 = vsel %vm1127, %v1111, %v1175
        %v1192 = vsel %vm1128, %v1112, %v1176
        %v1193 = vsel %vm1129, %v1113, %v1177
        %v1194 = vsel %vm1130, %v1114, %v1178
        %v1195 = vsel %vm1131, %v1115, %v1179
        %v1196 = vsel %vm1132, %v1116, %v1180
        %v1197 = vsel %vm1133, %v1117, %v1181
        %v1198 = vsel %vm1134, %v1118, %v1182
        %v1199 = vsel %vm1135, %v1119, %v1183
        %v1200 = vsel %vm1136, %v1120, %v1184
        %v1201 = vsel %vm1137, %v1121, %v1185
        %v1202 = vsel %vm1138, %v1122, %v1186
        %v1203 = vsel %vm1139, %v1123, %v1187
        %v1204 = vsel %vm1140, %v1124, %v1188
        %v1205 = vsel %vm1141, %v1125, %v1189
        %v1206 = vsel %vm1142, %v1126, %v1190
        %1207 = vst [vmem:[%s337] sm:$0xff] %v1191
        %1208 = vst [vmem:[%s337 + $0x8] sm:$0xff] %v1192
        %1209 = vst [vmem:[%s337 + $0x10] sm:$0xff] %v1193
        %1210 = vst [vmem:[%s337 + $0x18] sm:$0xff] %v1194
        %1211 = vst [vmem:[%s337 + $0x20] sm:$0xff] %v1195
        %1212 = vst [vmem:[%s337 + $0x28] sm:$0xff] %v1196
        %1213 = vst [vmem:[%s337 + $0x30] sm:$0xff] %v1197
        %1214 = vst [vmem:[%s337 + $0x38] sm:$0xff] %v1198
        %1215 = vst [vmem:[%s337 + $0x40] sm:$0xff] %v1199
        %1216 = vst [vmem:[%s337 + $0x48] sm:$0xff] %v1200
        %1217 = vst [vmem:[%s337 + $0x50] sm:$0xff] %v1201
        %1218 = vst [vmem:[%s337 + $0x58] sm:$0xff] %v1202
        %1219 = vst [vmem:[%s337 + $0x60] sm:$0xff] %v1203
        %1220 = vst [vmem:[%s337 + $0x68] sm:$0xff] %v1204
        %1221 = vst [vmem:[%s337 + $0x70] sm:$0xff] %v1205
        %1222 = vst [vmem:[%s337 + $0x78] sm:$0xff] %v1206
      $region44: #{sp_graph_attention.3} parent=35 // pred_fallthru
        _
      %s1223 = smul.u32 16, %s21
      %p1224 = scmp.lt.s32.totalorder %s20, 1
      %s1225 = scalar_select %p1224, %s20, 1
      %p1226 = scmp.lt.s32.totalorder %s1223, 15
      %s1227 = scalar_select %p1226, %s1223, 15
      %s1228 = smul.addr %s1225, 16
      %s1229 = sadd.s32 %s1227, %s1228
      %s1230 = smul.addr %s1229, 8
      %s1231 = scalar_lea.vmem %s4, %s1230
      // Predicated region
      $region45: #{sp_graph_attention.3} parent=35 // pred_check
        %p1232 = pneg %p166
      $region46: #{sp_graph_attention.3} parent=35 // pred_check_branch
        %1234 = sbr.rel (%p1232) target = $region48
      $region47: #{sp_graph_attention.3} parent=35 // pred_region
        %s1235 = smul.u32 16, %s21
      $region48: #{sp_graph_attention.3} parent=35 // pred_fallthru
        _
    $region36: #{sp_graph_attention.3} parent=5 // pred_fallthru
      _
    %p1236 = scmp.le.s32.totalorder 2, %s10
    // Predicated region
    $region49: #{sp_graph_attention.3} parent=5 // pred_check
      %p1237 = pneg %p1236
    $region50: #{sp_graph_attention.3} parent=5 // pred_check_branch
      %1239 = sbr.rel (%p1237) target = $region52
    $region51: #{sp_graph_attention.3} parent=5 // pred_region
      %s1240 = ssub.s32 %s10, 2
      // Predicated region
      $region53: #{sp_graph_attention.3} parent=51 // pred_check
        %p1241 = pneg %p172
      $region54: #{sp_graph_attention.3} parent=51 // pred_check_branch
        %1243 = sbr.rel (%p1241) target = $region56
      $region55: #{sp_graph_attention.3} parent=51 // pred_region
        %s1244 = smul.u32 16, %s24
        %p1245 = scmp.lt.s32.totalorder %s23, 1
        %s1246 = scalar_select %p1245, %s23, 1
        %p1247 = scmp.lt.s32.totalorder %s1244, 15
        %s1248 = scalar_select %p1247, %s1244, 15
        %s1249 = smul.addr %s1246, 16
        %s1250 = sadd.s32 %s1248, %s1249
        %s1251 = smul.addr %s1250, 8
        %s1252 = scalar_lea.vmem %s4, %s1251
      $region56: #{sp_graph_attention.3} parent=51 // pred_fallthru
        _
    $region52: #{sp_graph_attention.3} parent=5 // pred_fallthru
      _
  $region6: #{sp_graph_attention.3} parent=0 // loop_footer
    %s14 = sadd.s32 1, %s10
  $region7: #{sp_graph_attention.3} parent=0 // loop_footer_branch
    %9 = sbr.rel target = $region3
  $region8: #{sp_graph_attention.3} parent=0 // loop_exit
    _

</llo_original>
